<compile_context>
chip_gen: v7x
topology: tpu7x:2x2x1
jax: 0.10.0
libtpu: 0.0.40
codegen_flags: <defaults>
</compile_context>

<pallas_src>
import functools
import math

import jax
import jax.numpy as jnp
import numpy as np
from jax.experimental import pallas as pl
from jax.experimental.pallas import tpu as pltpu

LN_EPS = 1e-5  # PyTorch nn.LayerNorm default


def _layer_norm(v, gamma, beta):
    mu = jnp.mean(v, axis=-1, keepdims=True)
    var = jnp.mean((v - mu) ** 2, axis=-1, keepdims=True)
    return (v - mu) * jax.lax.rsqrt(var + LN_EPS) * gamma + beta


def decoder_block_kernel(
    x_ref,
    wq_ref, bq_ref, wk_ref, bk_ref, wv_ref, bv_ref, wo_ref, bo_ref,
    w1_ref, b1_ref, w2_ref, b2_ref,
    g1_ref, be1_ref, g2_ref, be2_ref,
    out_ref, attw_ref,
    *, num_heads, matmul_dtype,
):
    Bb, T, D = x_ref.shape
    H = num_heads
    dh = D // H

    # Fold the batch tile into the row dimension: all dense matmuls see M = Bb*T rows.
    x = x_ref[...].astype(jnp.float32).reshape(Bb * T, D)

    # ---- norm1 (f32 stats) ----
    x_norm = _layer_norm(x, g1_ref[0], be1_ref[0])
    x_nc = x_norm.astype(matmul_dtype)

    # ---- QKV projections over the whole batch tile (bf16 in, f32 accumulate) ----
    q = jnp.dot(x_nc, wq_ref[...], preferred_element_type=jnp.float32) + bq_ref[0]
    k = jnp.dot(x_nc, wk_ref[...], preferred_element_type=jnp.float32) + bk_ref[0]
    v = jnp.dot(x_nc, wv_ref[...], preferred_element_type=jnp.float32) + bv_ref[0]

    # Scale q once instead of scaling the (T, T) scores per head.
    q = q * (1.0 / math.sqrt(dh))

    # ---- multi-head self attention (Q=K=V=x_norm, mask=None), batched over the batch tile ----
    attw_parts = []
    ctx_parts = []
    for h in range(H):  # static unroll over heads; each head is a single batched contraction
        lo = h * dh
        qh = q[:, lo:lo + dh].reshape(Bb, T, dh).astype(matmul_dtype)
        kh = k[:, lo:lo + dh].reshape(Bb, T, dh).astype(matmul_dtype)
        vh = v[:, lo:lo + dh].reshape(Bb, T, dh).astype(matmul_dtype)

        s = jnp.einsum("bqd,bkd->bqk", qh, kh, preferred_element_type=jnp.float32)
        s = s - jnp.max(s, axis=-1, keepdims=True)
        e = jnp.exp(s)
        inv_den = pl.reciprocal(jnp.sum(e, axis=-1, keepdims=True), approx=True)
        p = e * inv_den                                  # (Bb, T, T) softmax, f32
        attw_parts.append(p)

        ctx = jnp.einsum("bqk,bkd->bqd", p.astype(matmul_dtype), vh,
                         preferred_element_type=jnp.float32)
        ctx_parts.append(ctx.reshape(Bb * T, dh))

    # Single store of the attention weights for all heads of the batch tile.
    attw_ref[...] = jnp.stack(attw_parts, axis=1).astype(attw_ref.dtype)   # (Bb, H, T, T)

    attn = jnp.concatenate(ctx_parts, axis=-1)           # (Bb*T, D)

    att_out = jnp.dot(attn.astype(matmul_dtype), wo_ref[...],
                      preferred_element_type=jnp.float32) + bo_ref[0]
    self_att = att_out + x                               # residual 1 (f32)

    # ---- norm2 + feed-forward (relu) over the whole batch tile ----
    ff_norm = _layer_norm(self_att, g2_ref[0], be2_ref[0])
    h1 = jnp.maximum(
        jnp.dot(ff_norm.astype(matmul_dtype), w1_ref[...],
                preferred_element_type=jnp.float32) + b1_ref[0], 0.0)
    ff = jnp.dot(h1.astype(matmul_dtype), w2_ref[...],
                 preferred_element_type=jnp.float32) + b2_ref[0]

    out_ref[...] = (ff + self_att).reshape(Bb, T, D).astype(out_ref.dtype)  # residual 2


def _pick_batch_tile(B, T, target_rows=256):
    """Largest divisor of B such that Bb*T stays near the MXU-friendly row target."""
    target = max(1, pl.cdiv(target_rows, T))
    bb = 1
    for cand in range(1, B + 1):
        if B % cand == 0 and cand <= target:
            bb = cand
    return bb


def decoder_block(x, params, num_heads, *, matmul_dtype=jnp.bfloat16, block_batch=None):
    B, T, D = x.shape
    d_ff = params["w1"].shape[1]
    H = num_heads
    dh = D // H

    Bb = block_batch if block_batch is not None else _pick_batch_tile(B, T)
    assert B % Bb == 0
    grid = (B // Bb,)

    # Cast weights to the matmul dtype at the boundary (halves weight DMA/VMEM for bf16);
    # biases and LayerNorm params stay f32 (added/applied in f32 vregs).
    cast = lambda w: w.astype(matmul_dtype)
    wq, wk, wv, wo = cast(params["wq"]), cast(params["wk"]), cast(params["wv"]), cast(params["wo"])
    w1, w2 = cast(params["w1"]), cast(params["w2"])

    full2d = lambda shape: pl.BlockSpec(shape, lambda b: (0, 0))

    in_specs = [
        pl.BlockSpec((Bb, T, D), lambda b: (b, 0, 0)),      # x (batch tile)
        full2d((D, D)), full2d((1, D)),                     # wq, bq
        full2d((D, D)), full2d((1, D)),                     # wk, bk
        full2d((D, D)), full2d((1, D)),                     # wv, bv
        full2d((D, D)), full2d((1, D)),                     # wo, bo
        full2d((D, d_ff)), full2d((1, d_ff)),               # w1, b1
        full2d((d_ff, D)), full2d((1, D)),                  # w2, b2
        full2d((1, D)), full2d((1, D)),                     # gamma1, beta1
        full2d((1, D)), full2d((1, D)),                     # gamma2, beta2
    ]
    out_specs = (
        pl.BlockSpec((Bb, T, D), lambda b: (b, 0, 0)),
        pl.BlockSpec((Bb, H, T, T), lambda b: (b, 0, 0, 0)),
    )
    out_shape = (
        jax.ShapeDtypeStruct((B, T, D), jnp.float32),
        jax.ShapeDtypeStruct((B, H, T, T), jnp.float32),
    )

    # Advisory cost estimate so XLA does not treat the custom call as free.
    flops = int(
        2 * B * T * D * D * 4          # q/k/v/o projections
        + 2 * B * T * D * d_ff * 2     # ff up + down
        + 2 * B * H * T * T * dh * 2   # scores + p@v
    )
    transcendentals = int(B * H * T * T)  # exp in softmax
    weight_arrays = [wq, wk, wv, wo, w1, w2]
    small_arrays = [params[k] for k in
                    ("bq", "bk", "bv", "bo", "b1", "b2", "g1", "be1", "g2", "be2")]
    bytes_accessed = int(
        x.size * x.dtype.itemsize
        + sum(a.size * a.dtype.itemsize for a in weight_arrays)
        + sum(a.size * a.dtype.itemsize for a in small_arrays)
        + B * T * D * 4            # out
        + B * H * T * T * 4        # attention weights
    )

    kernel = functools.partial(decoder_block_kernel, num_heads=num_heads,
                               matmul_dtype=matmul_dtype)
    return pl.pallas_call(
        kernel,
        out_shape=out_shape,
        grid_spec=pltpu.PrefetchScalarGridSpec(
            num_scalar_prefetch=0,
            grid=grid,
            in_specs=in_specs,
            out_specs=out_specs,
        ),
        compiler_params=pltpu.CompilerParams(
            dimension_semantics=("parallel",),  # batch tiles are independent (2 TCs on v7x)
        ),
        cost_estimate=pl.CostEstimate(
            flops=flops, transcendentals=transcendentals, bytes_accessed=bytes_accessed),
    )(
        x,
        wq, params["bq"], wk, params["bk"],
        wv, params["bv"], wo, params["bo"],
        w1, params["b1"], w2, params["b2"],
        params["g1"], params["be1"], params["g2"], params["be2"],
    )


def decoder_block_ref(x, params, num_heads):
    """Pure-JAX reference (same math as the PyTorch module in eval mode, mask=None)."""
    B, T, D = x.shape
    dh = D // num_heads

    def ln(v, g, b):
        mu = jnp.mean(v, -1, keepdims=True)
        var = jnp.mean((v - mu) ** 2, -1, keepdims=True)
        return (v - mu) / jnp.sqrt(var + LN_EPS) * g + b

    x_norm = ln(x, params["g1"][0], params["be1"][0])
    q = x_norm @ params["wq"] + params["bq"][0]
    k = x_norm @ params["wk"] + params["bk"][0]
    v = x_norm @ params["wv"] + params["bv"][0]
    qh = q.reshape(B, T, num_heads, dh).transpose(0, 2, 1, 3)
    kh = k.reshape(B, T, num_heads, dh).transpose(0, 2, 1, 3)
    vh = v.reshape(B, T, num_heads, dh).transpose(0, 2, 1, 3)
    scores = jnp.einsum("bhqd,bhkd->bhqk", qh, kh) / math.sqrt(dh)
    w = jax.nn.softmax(scores, axis=-1)
    attn = jnp.einsum("bhqk,bhkd->bhqd", w, vh).transpose(0, 2, 1, 3).reshape(B, T, D)
    att_out = attn @ params["wo"] + params["bo"][0]
    self_att = att_out + x
    ff_norm = ln(self_att, params["g2"][0], params["be2"][0])
    ff = jnp.maximum(ff_norm @ params["w1"] + params["b1"][0], 0.0) @ params["w2"] + params["b2"][0]
    return ff + self_att, w


if __name__ == "__main__":
    B, T, d_model, d_ff, num_heads = 2, 8, 32, 64, 4

    key = jax.random.PRNGKey(0)
    keys = jax.random.split(key, 16)
    s = 0.05
    params = {
        "wq": jax.random.normal(keys[0], (d_model, d_model), jnp.float32) * s,
        "bq": jax.random.normal(keys[1], (1, d_model), jnp.float32) * s,
        "wk": jax.random.normal(keys[2], (d_model, d_model), jnp.float32) * s,
        "bk": jax.random.normal(keys[3], (1, d_model), jnp.float32) * s,
        "wv": jax.random.normal(keys[4], (d_model, d_model), jnp.float32) * s,
        "bv": jax.random.normal(keys[5], (1, d_model), jnp.float32) * s,
        "wo": jax.random.normal(keys[6], (d_model, d_model), jnp.float32) * s,
        "bo": jax.random.normal(keys[7], (1, d_model), jnp.float32) * s,
        "w1": jax.random.normal(keys[8], (d_model, d_ff), jnp.float32) * s,
        "b1": jax.random.normal(keys[9], (1, d_ff), jnp.float32) * s,
        "w2": jax.random.normal(keys[10], (d_ff, d_model), jnp.float32) * s,
        "b2": jax.random.normal(keys[11], (1, d_model), jnp.float32) * s,
        "g1": jnp.ones((1, d_model), jnp.float32),
        "be1": jnp.zeros((1, d_model), jnp.float32),
        "g2": jnp.ones((1, d_model), jnp.float32),
        "be2": jnp.zeros((1, d_model), jnp.float32),
    }

    x = jax.random.normal(keys[12], (B, T, d_model), jnp.float32)

    out_exp, attw_exp = decoder_block_ref(x, params, num_heads)

    # Perf configuration: bf16 matmul operands, f32 accumulation / stats.
    out_bf16, attw_bf16 = decoder_block(x, params, num_heads, matmul_dtype=jnp.bfloat16)
    out_bf16 = jax.block_until_ready(out_bf16)
    attw_bf16 = jax.block_until_ready(attw_bf16)
    np.testing.assert_allclose(np.asarray(out_bf16), np.asarray(out_exp), rtol=3e-2, atol=3e-2)
    np.testing.assert_allclose(np.asarray(attw_bf16), np.asarray(attw_exp), rtol=3e-2, atol=3e-2)

    # Full-precision path (tight check of the kernel math itself).
    out_f32, attw_f32 = decoder_block(x, params, num_heads, matmul_dtype=jnp.float32)
    out_f32 = jax.block_until_ready(out_f32)
    attw_f32 = jax.block_until_ready(attw_f32)
    np.testing.assert_allclose(np.asarray(out_f32), np.asarray(out_exp), rtol=5e-3, atol=5e-3)
    np.testing.assert_allclose(np.asarray(attw_f32), np.asarray(attw_exp), rtol=5e-3, atol=5e-3)

    print("KERNEL_OK")
</pallas_src>

<mosaic_0001>
module attributes {stable_mosaic.version = 11 : i64} {
  func.func @decoder_block_kernel(%arg0: i32, %arg1: memref<2x8x32xf32, #tpu.memory_space<vmem>>, %arg2: memref<32x32xbf16, #tpu.memory_space<vmem>>, %arg3: memref<1x32xf32, #tpu.memory_space<vmem>>, %arg4: memref<32x32xbf16, #tpu.memory_space<vmem>>, %arg5: memref<1x32xf32, #tpu.memory_space<vmem>>, %arg6: memref<32x32xbf16, #tpu.memory_space<vmem>>, %arg7: memref<1x32xf32, #tpu.memory_space<vmem>>, %arg8: memref<32x32xbf16, #tpu.memory_space<vmem>>, %arg9: memref<1x32xf32, #tpu.memory_space<vmem>>, %arg10: memref<32x64xbf16, #tpu.memory_space<vmem>>, %arg11: memref<1x64xf32, #tpu.memory_space<vmem>>, %arg12: memref<64x32xbf16, #tpu.memory_space<vmem>>, %arg13: memref<1x32xf32, #tpu.memory_space<vmem>>, %arg14: memref<1x32xf32, #tpu.memory_space<vmem>>, %arg15: memref<1x32xf32, #tpu.memory_space<vmem>>, %arg16: memref<1x32xf32, #tpu.memory_space<vmem>>, %arg17: memref<1x32xf32, #tpu.memory_space<vmem>>, %arg18: memref<2x8x32xf32, #tpu.memory_space<vmem>>, %arg19: memref<2x4x8x8xf32, #tpu.memory_space<vmem>>) attributes {dimension_semantics = [#tpu.dimension_semantics<parallel>], iteration_bounds = array<i64: 1>, scalar_prefetch = 0 : i64, scratch_operands = 0 : i64, tpu.core_type = #tpu.core_type<tc>, window_params = [{transform_indices = @transform_0, window_bounds = array<i64: 2, 8, 32>}, {pipeline_mode = #tpu.pipeline_mode<synchronous>, transform_indices = @transform_1, window_bounds = array<i64: 32, 32>}, {pipeline_mode = #tpu.pipeline_mode<synchronous>, transform_indices = @transform_2, window_bounds = array<i64: 1, 32>}, {pipeline_mode = #tpu.pipeline_mode<synchronous>, transform_indices = @transform_3, window_bounds = array<i64: 32, 32>}, {pipeline_mode = #tpu.pipeline_mode<synchronous>, transform_indices = @transform_4, window_bounds = array<i64: 1, 32>}, {pipeline_mode = #tpu.pipeline_mode<synchronous>, transform_indices = @transform_5, window_bounds = array<i64: 32, 32>}, {pipeline_mode = #tpu.pipeline_mode<synchronous>, transform_indices = @transform_6, window_bounds = array<i64: 1, 32>}, {pipeline_mode = #tpu.pipeline_mode<synchronous>, transform_indices = @transform_7, window_bounds = array<i64: 32, 32>}, {pipeline_mode = #tpu.pipeline_mode<synchronous>, transform_indices = @transform_8, window_bounds = array<i64: 1, 32>}, {pipeline_mode = #tpu.pipeline_mode<synchronous>, transform_indices = @transform_9, window_bounds = array<i64: 32, 64>}, {pipeline_mode = #tpu.pipeline_mode<synchronous>, transform_indices = @transform_10, window_bounds = array<i64: 1, 64>}, {pipeline_mode = #tpu.pipeline_mode<synchronous>, transform_indices = @transform_11, window_bounds = array<i64: 64, 32>}, {pipeline_mode = #tpu.pipeline_mode<synchronous>, transform_indices = @transform_12, window_bounds = array<i64: 1, 32>}, {pipeline_mode = #tpu.pipeline_mode<synchronous>, transform_indices = @transform_13, window_bounds = array<i64: 1, 32>}, {pipeline_mode = #tpu.pipeline_mode<synchronous>, transform_indices = @transform_14, window_bounds = array<i64: 1, 32>}, {pipeline_mode = #tpu.pipeline_mode<synchronous>, transform_indices = @transform_15, window_bounds = array<i64: 1, 32>}, {pipeline_mode = #tpu.pipeline_mode<synchronous>, transform_indices = @transform_16, window_bounds = array<i64: 1, 32>}, {transform_indices = @transform_17, window_bounds = array<i64: 2, 8, 32>}, {transform_indices = @transform_18, window_bounds = array<i64: 2, 4, 8, 8>}]} {
    %c0 = arith.constant 0 : index
    %c0_0 = arith.constant 0 : index
    %c0_1 = arith.constant 0 : index
    %0 = vector.load %arg1[%c0, %c0_0, %c0_1] : memref<2x8x32xf32, #tpu.memory_space<vmem>>, vector<2x8x32xf32>
    %1 = vector.shape_cast %0 : vector<2x8x32xf32> to vector<16x32xf32>
    %c0_2 = arith.constant 0 : index
    %c0_3 = arith.constant 0 : index
    %2 = vector.load %arg14[%c0_2, %c0_3] : memref<1x32xf32, #tpu.memory_space<vmem>>, vector<1x32xf32>
    %3 = vector.shape_cast %2 : vector<1x32xf32> to vector<32xf32>
    %c0_4 = arith.constant 0 : index
    %c0_5 = arith.constant 0 : index
    %4 = vector.load %arg15[%c0_4, %c0_5] : memref<1x32xf32, #tpu.memory_space<vmem>>, vector<1x32xf32>
    %5 = vector.shape_cast %4 : vector<1x32xf32> to vector<32xf32>
    %cst = arith.constant dense<0.000000e+00> : vector<16xf32>
    %6 = vector.multi_reduction <add>, %1, %cst [1] : vector<16x32xf32> to vector<16xf32>
    %7 = vector.shape_cast %6 : vector<16xf32> to vector<16x1xf32>
    %cst_6 = arith.constant 3.200000e+01 : f32
    %8 = vector.broadcast %cst_6 : f32 to vector<16x1xf32>
    %9 = arith.divf %7, %8 : vector<16x1xf32>
    %10 = vector.broadcast %9 : vector<16x1xf32> to vector<16x32xf32>
    %11 = arith.subf %1, %10 : vector<16x32xf32>
    %12 = arith.mulf %11, %11 : vector<16x32xf32>
    %cst_7 = arith.constant dense<0.000000e+00> : vector<16xf32>
    %13 = vector.multi_reduction <add>, %12, %cst_7 [1] : vector<16x32xf32> to vector<16xf32>
    %14 = vector.shape_cast %13 : vector<16xf32> to vector<16x1xf32>
    %cst_8 = arith.constant 3.200000e+01 : f32
    %15 = vector.broadcast %cst_8 : f32 to vector<16x1xf32>
    %16 = arith.divf %14, %15 : vector<16x1xf32>
    %17 = vector.broadcast %9 : vector<16x1xf32> to vector<16x32xf32>
    %18 = arith.subf %1, %17 : vector<16x32xf32>
    %cst_9 = arith.constant 9.99999974E-6 : f32
    %19 = vector.broadcast %cst_9 : f32 to vector<16x1xf32>
    %20 = arith.addf %16, %19 : vector<16x1xf32>
    %21 = math.rsqrt %20 : vector<16x1xf32>
    %22 = vector.broadcast %21 : vector<16x1xf32> to vector<16x32xf32>
    %23 = arith.mulf %18, %22 : vector<16x32xf32>
    %24 = vector.shape_cast %3 : vector<32xf32> to vector<1x32xf32>
    %25 = vector.broadcast %24 : vector<1x32xf32> to vector<16x32xf32>
    %26 = arith.mulf %23, %25 : vector<16x32xf32>
    %27 = vector.shape_cast %5 : vector<32xf32> to vector<1x32xf32>
    %28 = vector.broadcast %27 : vector<1x32xf32> to vector<16x32xf32>
    %29 = arith.addf %26, %28 : vector<16x32xf32>
    %30 = arith.truncf %29 : vector<16x32xf32> to vector<16x32xbf16>
    %c0_10 = arith.constant 0 : index
    %c0_11 = arith.constant 0 : index
    %31 = vector.load %arg2[%c0_10, %c0_11] : memref<32x32xbf16, #tpu.memory_space<vmem>>, vector<32x32xbf16>
    %cst_12 = arith.constant dense<0.000000e+00> : vector<16x32xf32>
    %32 = tpu.matmul %30, %31, %cst_12 {dimension_numbers = #tpu.dot_dimension_numbers<[1], [0], [0], [1], [0, 0, 1, 1], [], []>} : vector<16x32xbf16>, vector<32x32xbf16>, vector<16x32xf32> -> vector<16x32xf32>
    %c0_13 = arith.constant 0 : index
    %c0_14 = arith.constant 0 : index
    %33 = vector.load %arg3[%c0_13, %c0_14] : memref<1x32xf32, #tpu.memory_space<vmem>>, vector<1x32xf32>
    %34 = vector.shape_cast %33 : vector<1x32xf32> to vector<32xf32>
    %35 = vector.shape_cast %34 : vector<32xf32> to vector<1x32xf32>
    %36 = vector.broadcast %35 : vector<1x32xf32> to vector<16x32xf32>
    %37 = arith.addf %32, %36 : vector<16x32xf32>
    %c0_15 = arith.constant 0 : index
    %c0_16 = arith.constant 0 : index
    %38 = vector.load %arg4[%c0_15, %c0_16] : memref<32x32xbf16, #tpu.memory_space<vmem>>, vector<32x32xbf16>
    %cst_17 = arith.constant dense<0.000000e+00> : vector<16x32xf32>
    %39 = tpu.matmul %30, %38, %cst_17 {dimension_numbers = #tpu.dot_dimension_numbers<[1], [0], [0], [1], [0, 0, 1, 1], [], []>} : vector<16x32xbf16>, vector<32x32xbf16>, vector<16x32xf32> -> vector<16x32xf32>
    %c0_18 = arith.constant 0 : index
    %c0_19 = arith.constant 0 : index
    %40 = vector.load %arg5[%c0_18, %c0_19] : memref<1x32xf32, #tpu.memory_space<vmem>>, vector<1x32xf32>
    %41 = vector.shape_cast %40 : vector<1x32xf32> to vector<32xf32>
    %42 = vector.shape_cast %41 : vector<32xf32> to vector<1x32xf32>
    %43 = vector.broadcast %42 : vector<1x32xf32> to vector<16x32xf32>
    %44 = arith.addf %39, %43 : vector<16x32xf32>
    %c0_20 = arith.constant 0 : index
    %c0_21 = arith.constant 0 : index
    %45 = vector.load %arg6[%c0_20, %c0_21] : memref<32x32xbf16, #tpu.memory_space<vmem>>, vector<32x32xbf16>
    %cst_22 = arith.constant dense<0.000000e+00> : vector<16x32xf32>
    %46 = tpu.matmul %30, %45, %cst_22 {dimension_numbers = #tpu.dot_dimension_numbers<[1], [0], [0], [1], [0, 0, 1, 1], [], []>} : vector<16x32xbf16>, vector<32x32xbf16>, vector<16x32xf32> -> vector<16x32xf32>
    %c0_23 = arith.constant 0 : index
    %c0_24 = arith.constant 0 : index
    %47 = vector.load %arg7[%c0_23, %c0_24] : memref<1x32xf32, #tpu.memory_space<vmem>>, vector<1x32xf32>
    %48 = vector.shape_cast %47 : vector<1x32xf32> to vector<32xf32>
    %49 = vector.shape_cast %48 : vector<32xf32> to vector<1x32xf32>
    %50 = vector.broadcast %49 : vector<1x32xf32> to vector<16x32xf32>
    %51 = arith.addf %46, %50 : vector<16x32xf32>
    %cst_25 = arith.constant 0.353553385 : f32
    %52 = vector.broadcast %cst_25 : f32 to vector<16x32xf32>
    %53 = arith.mulf %37, %52 : vector<16x32xf32>
    %54 = vector.extract_strided_slice %53 {offsets = [0, 0], sizes = [16, 8], strides = [1, 1]} : vector<16x32xf32> to vector<16x8xf32>
    %55 = vector.shape_cast %54 : vector<16x8xf32> to vector<2x8x8xf32>
    %56 = arith.truncf %55 : vector<2x8x8xf32> to vector<2x8x8xbf16>
    %57 = vector.extract_strided_slice %44 {offsets = [0, 0], sizes = [16, 8], strides = [1, 1]} : vector<16x32xf32> to vector<16x8xf32>
    %58 = vector.shape_cast %57 : vector<16x8xf32> to vector<2x8x8xf32>
    %59 = arith.truncf %58 : vector<2x8x8xf32> to vector<2x8x8xbf16>
    %60 = vector.extract_strided_slice %51 {offsets = [0, 0], sizes = [16, 8], strides = [1, 1]} : vector<16x32xf32> to vector<16x8xf32>
    %61 = vector.shape_cast %60 : vector<16x8xf32> to vector<2x8x8xf32>
    %62 = arith.truncf %61 : vector<2x8x8xf32> to vector<2x8x8xbf16>
    "tpu.trace_start"() <{level = 10 : i32, message = "bqd,bkd->bqk"}> : () -> ()
    %cst_26 = arith.constant dense<0.000000e+00> : vector<2x8x8xf32>
    %63 = tpu.matmul %56, %59, %cst_26 {dimension_numbers = #tpu.dot_dimension_numbers<[2], [2], [1], [1], [0, 0, 0, 1, 1, 1], [0], [0]>} : vector<2x8x8xbf16>, vector<2x8x8xbf16>, vector<2x8x8xf32> -> vector<2x8x8xf32>
    "tpu.trace_stop"() : () -> ()
    %cst_27 = arith.constant dense<0xFF800000> : vector<2x8xf32>
    %64 = vector.multi_reduction <maximumf>, %63, %cst_27 [2] : vector<2x8x8xf32> to vector<2x8xf32>
    %65 = vector.shape_cast %64 : vector<2x8xf32> to vector<2x8x1xf32>
    %66 = vector.broadcast %65 : vector<2x8x1xf32> to vector<2x8x8xf32>
    %67 = arith.subf %63, %66 : vector<2x8x8xf32>
    %68 = math.exp %67 : vector<2x8x8xf32>
    %cst_28 = arith.constant dense<0.000000e+00> : vector<2x8xf32>
    %69 = vector.multi_reduction <add>, %68, %cst_28 [2] : vector<2x8x8xf32> to vector<2x8xf32>
    %70 = vector.shape_cast %69 : vector<2x8xf32> to vector<2x8x1xf32>
    %71 = tpu.reciprocal %70 {approx = true} : vector<2x8x1xf32> -> vector<2x8x1xf32>
    %72 = vector.broadcast %71 : vector<2x8x1xf32> to vector<2x8x8xf32>
    %73 = arith.mulf %68, %72 : vector<2x8x8xf32>
    %74 = arith.truncf %73 : vector<2x8x8xf32> to vector<2x8x8xbf16>
    "tpu.trace_start"() <{level = 10 : i32, message = "bqk,bkd->bqd"}> : () -> ()
    %cst_29 = arith.constant dense<0.000000e+00> : vector<2x8x8xf32>
    %75 = tpu.matmul %74, %62, %cst_29 {dimension_numbers = #tpu.dot_dimension_numbers<[2], [1], [1], [2], [0, 0, 0, 1, 1, 2], [0], [0]>} : vector<2x8x8xbf16>, vector<2x8x8xbf16>, vector<2x8x8xf32> -> vector<2x8x8xf32>
    "tpu.trace_stop"() : () -> ()
    %76 = vector.shape_cast %75 : vector<2x8x8xf32> to vector<16x8xf32>
    %77 = vector.extract_strided_slice %53 {offsets = [0, 8], sizes = [16, 8], strides = [1, 1]} : vector<16x32xf32> to vector<16x8xf32>
    %78 = vector.shape_cast %77 : vector<16x8xf32> to vector<2x8x8xf32>
    %79 = arith.truncf %78 : vector<2x8x8xf32> to vector<2x8x8xbf16>
    %80 = vector.extract_strided_slice %44 {offsets = [0, 8], sizes = [16, 8], strides = [1, 1]} : vector<16x32xf32> to vector<16x8xf32>
    %81 = vector.shape_cast %80 : vector<16x8xf32> to vector<2x8x8xf32>
    %82 = arith.truncf %81 : vector<2x8x8xf32> to vector<2x8x8xbf16>
    %83 = vector.extract_strided_slice %51 {offsets = [0, 8], sizes = [16, 8], strides = [1, 1]} : vector<16x32xf32> to vector<16x8xf32>
    %84 = vector.shape_cast %83 : vector<16x8xf32> to vector<2x8x8xf32>
    %85 = arith.truncf %84 : vector<2x8x8xf32> to vector<2x8x8xbf16>
    "tpu.trace_start"() <{level = 10 : i32, message = "bqd,bkd->bqk"}> : () -> ()
    %cst_30 = arith.constant dense<0.000000e+00> : vector<2x8x8xf32>
    %86 = tpu.matmul %79, %82, %cst_30 {dimension_numbers = #tpu.dot_dimension_numbers<[2], [2], [1], [1], [0, 0, 0, 1, 1, 1], [0], [0]>} : vector<2x8x8xbf16>, vector<2x8x8xbf16>, vector<2x8x8xf32> -> vector<2x8x8xf32>
    "tpu.trace_stop"() : () -> ()
    %cst_31 = arith.constant dense<0xFF800000> : vector<2x8xf32>
    %87 = vector.multi_reduction <maximumf>, %86, %cst_31 [2] : vector<2x8x8xf32> to vector<2x8xf32>
    %88 = vector.shape_cast %87 : vector<2x8xf32> to vector<2x8x1xf32>
    %89 = vector.broadcast %88 : vector<2x8x1xf32> to vector<2x8x8xf32>
    %90 = arith.subf %86, %89 : vector<2x8x8xf32>
    %91 = math.exp %90 : vector<2x8x8xf32>
    %cst_32 = arith.constant dense<0.000000e+00> : vector<2x8xf32>
    %92 = vector.multi_reduction <add>, %91, %cst_32 [2] : vector<2x8x8xf32> to vector<2x8xf32>
    %93 = vector.shape_cast %92 : vector<2x8xf32> to vector<2x8x1xf32>
    %94 = tpu.reciprocal %93 {approx = true} : vector<2x8x1xf32> -> vector<2x8x1xf32>
    %95 = vector.broadcast %94 : vector<2x8x1xf32> to vector<2x8x8xf32>
    %96 = arith.mulf %91, %95 : vector<2x8x8xf32>
    %97 = arith.truncf %96 : vector<2x8x8xf32> to vector<2x8x8xbf16>
    "tpu.trace_start"() <{level = 10 : i32, message = "bqk,bkd->bqd"}> : () -> ()
    %cst_33 = arith.constant dense<0.000000e+00> : vector<2x8x8xf32>
    %98 = tpu.matmul %97, %85, %cst_33 {dimension_numbers = #tpu.dot_dimension_numbers<[2], [1], [1], [2], [0, 0, 0, 1, 1, 2], [0], [0]>} : vector<2x8x8xbf16>, vector<2x8x8xbf16>, vector<2x8x8xf32> -> vector<2x8x8xf32>
    "tpu.trace_stop"() : () -> ()
    %99 = vector.shape_cast %98 : vector<2x8x8xf32> to vector<16x8xf32>
    %100 = vector.extract_strided_slice %53 {offsets = [0, 16], sizes = [16, 8], strides = [1, 1]} : vector<16x32xf32> to vector<16x8xf32>
    %101 = vector.shape_cast %100 : vector<16x8xf32> to vector<2x8x8xf32>
    %102 = arith.truncf %101 : vector<2x8x8xf32> to vector<2x8x8xbf16>
    %103 = vector.extract_strided_slice %44 {offsets = [0, 16], sizes = [16, 8], strides = [1, 1]} : vector<16x32xf32> to vector<16x8xf32>
    %104 = vector.shape_cast %103 : vector<16x8xf32> to vector<2x8x8xf32>
    %105 = arith.truncf %104 : vector<2x8x8xf32> to vector<2x8x8xbf16>
    %106 = vector.extract_strided_slice %51 {offsets = [0, 16], sizes = [16, 8], strides = [1, 1]} : vector<16x32xf32> to vector<16x8xf32>
    %107 = vector.shape_cast %106 : vector<16x8xf32> to vector<2x8x8xf32>
    %108 = arith.truncf %107 : vector<2x8x8xf32> to vector<2x8x8xbf16>
    "tpu.trace_start"() <{level = 10 : i32, message = "bqd,bkd->bqk"}> : () -> ()
    %cst_34 = arith.constant dense<0.000000e+00> : vector<2x8x8xf32>
    %109 = tpu.matmul %102, %105, %cst_34 {dimension_numbers = #tpu.dot_dimension_numbers<[2], [2], [1], [1], [0, 0, 0, 1, 1, 1], [0], [0]>} : vector<2x8x8xbf16>, vector<2x8x8xbf16>, vector<2x8x8xf32> -> vector<2x8x8xf32>
    "tpu.trace_stop"() : () -> ()
    %cst_35 = arith.constant dense<0xFF800000> : vector<2x8xf32>
    %110 = vector.multi_reduction <maximumf>, %109, %cst_35 [2] : vector<2x8x8xf32> to vector<2x8xf32>
    %111 = vector.shape_cast %110 : vector<2x8xf32> to vector<2x8x1xf32>
    %112 = vector.broadcast %111 : vector<2x8x1xf32> to vector<2x8x8xf32>
    %113 = arith.subf %109, %112 : vector<2x8x8xf32>
    %114 = math.exp %113 : vector<2x8x8xf32>
    %cst_36 = arith.constant dense<0.000000e+00> : vector<2x8xf32>
    %115 = vector.multi_reduction <add>, %114, %cst_36 [2] : vector<2x8x8xf32> to vector<2x8xf32>
    %116 = vector.shape_cast %115 : vector<2x8xf32> to vector<2x8x1xf32>
    %117 = tpu.reciprocal %116 {approx = true} : vector<2x8x1xf32> -> vector<2x8x1xf32>
    %118 = vector.broadcast %117 : vector<2x8x1xf32> to vector<2x8x8xf32>
    %119 = arith.mulf %114, %118 : vector<2x8x8xf32>
    %120 = arith.truncf %119 : vector<2x8x8xf32> to vector<2x8x8xbf16>
    "tpu.trace_start"() <{level = 10 : i32, message = "bqk,bkd->bqd"}> : () -> ()
    %cst_37 = arith.constant dense<0.000000e+00> : vector<2x8x8xf32>
    %121 = tpu.matmul %120, %108, %cst_37 {dimension_numbers = #tpu.dot_dimension_numbers<[2], [1], [1], [2], [0, 0, 0, 1, 1, 2], [0], [0]>} : vector<2x8x8xbf16>, vector<2x8x8xbf16>, vector<2x8x8xf32> -> vector<2x8x8xf32>
    "tpu.trace_stop"() : () -> ()
    %122 = vector.shape_cast %121 : vector<2x8x8xf32> to vector<16x8xf32>
    %123 = vector.extract_strided_slice %53 {offsets = [0, 24], sizes = [16, 8], strides = [1, 1]} : vector<16x32xf32> to vector<16x8xf32>
    %124 = vector.shape_cast %123 : vector<16x8xf32> to vector<2x8x8xf32>
    %125 = arith.truncf %124 : vector<2x8x8xf32> to vector<2x8x8xbf16>
    %126 = vector.extract_strided_slice %44 {offsets = [0, 24], sizes = [16, 8], strides = [1, 1]} : vector<16x32xf32> to vector<16x8xf32>
    %127 = vector.shape_cast %126 : vector<16x8xf32> to vector<2x8x8xf32>
    %128 = arith.truncf %127 : vector<2x8x8xf32> to vector<2x8x8xbf16>
    %129 = vector.extract_strided_slice %51 {offsets = [0, 24], sizes = [16, 8], strides = [1, 1]} : vector<16x32xf32> to vector<16x8xf32>
    %130 = vector.shape_cast %129 : vector<16x8xf32> to vector<2x8x8xf32>
    %131 = arith.truncf %130 : vector<2x8x8xf32> to vector<2x8x8xbf16>
    "tpu.trace_start"() <{level = 10 : i32, message = "bqd,bkd->bqk"}> : () -> ()
    %cst_38 = arith.constant dense<0.000000e+00> : vector<2x8x8xf32>
    %132 = tpu.matmul %125, %128, %cst_38 {dimension_numbers = #tpu.dot_dimension_numbers<[2], [2], [1], [1], [0, 0, 0, 1, 1, 1], [0], [0]>} : vector<2x8x8xbf16>, vector<2x8x8xbf16>, vector<2x8x8xf32> -> vector<2x8x8xf32>
    "tpu.trace_stop"() : () -> ()
    %cst_39 = arith.constant dense<0xFF800000> : vector<2x8xf32>
    %133 = vector.multi_reduction <maximumf>, %132, %cst_39 [2] : vector<2x8x8xf32> to vector<2x8xf32>
    %134 = vector.shape_cast %133 : vector<2x8xf32> to vector<2x8x1xf32>
    %135 = vector.broadcast %134 : vector<2x8x1xf32> to vector<2x8x8xf32>
    %136 = arith.subf %132, %135 : vector<2x8x8xf32>
    %137 = math.exp %136 : vector<2x8x8xf32>
    %cst_40 = arith.constant dense<0.000000e+00> : vector<2x8xf32>
    %138 = vector.multi_reduction <add>, %137, %cst_40 [2] : vector<2x8x8xf32> to vector<2x8xf32>
    %139 = vector.shape_cast %138 : vector<2x8xf32> to vector<2x8x1xf32>
    %140 = tpu.reciprocal %139 {approx = true} : vector<2x8x1xf32> -> vector<2x8x1xf32>
    %141 = vector.broadcast %140 : vector<2x8x1xf32> to vector<2x8x8xf32>
    %142 = arith.mulf %137, %141 : vector<2x8x8xf32>
    %143 = arith.truncf %142 : vector<2x8x8xf32> to vector<2x8x8xbf16>
    "tpu.trace_start"() <{level = 10 : i32, message = "bqk,bkd->bqd"}> : () -> ()
    %cst_41 = arith.constant dense<0.000000e+00> : vector<2x8x8xf32>
    %144 = tpu.matmul %143, %131, %cst_41 {dimension_numbers = #tpu.dot_dimension_numbers<[2], [1], [1], [2], [0, 0, 0, 1, 1, 2], [0], [0]>} : vector<2x8x8xbf16>, vector<2x8x8xbf16>, vector<2x8x8xf32> -> vector<2x8x8xf32>
    "tpu.trace_stop"() : () -> ()
    %145 = vector.shape_cast %144 : vector<2x8x8xf32> to vector<16x8xf32>
    %146 = vector.shape_cast %73 : vector<2x8x8xf32> to vector<2x1x8x8xf32>
    %147 = vector.shape_cast %96 : vector<2x8x8xf32> to vector<2x1x8x8xf32>
    %148 = vector.shape_cast %119 : vector<2x8x8xf32> to vector<2x1x8x8xf32>
    %149 = vector.shape_cast %142 : vector<2x8x8xf32> to vector<2x1x8x8xf32>
    %150 = tpu.concatenate %146, %147, %148, %149 in 1 : vector<2x1x8x8xf32>, vector<2x1x8x8xf32>, vector<2x1x8x8xf32>, vector<2x1x8x8xf32> -> vector<2x4x8x8xf32>
    %c0_42 = arith.constant 0 : index
    %c0_43 = arith.constant 0 : index
    %c0_44 = arith.constant 0 : index
    %c0_45 = arith.constant 0 : index
    %151 = vector.load %arg19[%c0_42, %c0_43, %c0_44, %c0_45] : memref<2x4x8x8xf32, #tpu.memory_space<vmem>>, vector<2x4x8x8xf32>
    tpu.vector_store %arg19[%c0_42, %c0_43, %c0_44, %c0_45], %150 {strides = array<i32>} : memref<2x4x8x8xf32, #tpu.memory_space<vmem>>, vector<2x4x8x8xf32>,
    %152 = tpu.concatenate %76, %99, %122, %145 in 1 : vector<16x8xf32>, vector<16x8xf32>, vector<16x8xf32>, vector<16x8xf32> -> vector<16x32xf32>
    %153 = arith.truncf %152 : vector<16x32xf32> to vector<16x32xbf16>
    %c0_46 = arith.constant 0 : index
    %c0_47 = arith.constant 0 : index
    %154 = vector.load %arg8[%c0_46, %c0_47] : memref<32x32xbf16, #tpu.memory_space<vmem>>, vector<32x32xbf16>
    %cst_48 = arith.constant dense<0.000000e+00> : vector<16x32xf32>
    %155 = tpu.matmul %153, %154, %cst_48 {dimension_numbers = #tpu.dot_dimension_numbers<[1], [0], [0], [1], [0, 0, 1, 1], [], []>} : vector<16x32xbf16>, vector<32x32xbf16>, vector<16x32xf32> -> vector<16x32xf32>
    %c0_49 = arith.constant 0 : index
    %c0_50 = arith.constant 0 : index
    %156 = vector.load %arg9[%c0_49, %c0_50] : memref<1x32xf32, #tpu.memory_space<vmem>>, vector<1x32xf32>
    %157 = vector.shape_cast %156 : vector<1x32xf32> to vector<32xf32>
    %158 = vector.shape_cast %157 : vector<32xf32> to vector<1x32xf32>
    %159 = vector.broadcast %158 : vector<1x32xf32> to vector<16x32xf32>
    %160 = arith.addf %155, %159 : vector<16x32xf32>
    %161 = arith.addf %160, %1 : vector<16x32xf32>
    %c0_51 = arith.constant 0 : index
    %c0_52 = arith.constant 0 : index
    %162 = vector.load %arg16[%c0_51, %c0_52] : memref<1x32xf32, #tpu.memory_space<vmem>>, vector<1x32xf32>
    %163 = vector.shape_cast %162 : vector<1x32xf32> to vector<32xf32>
    %c0_53 = arith.constant 0 : index
    %c0_54 = arith.constant 0 : index
    %164 = vector.load %arg17[%c0_53, %c0_54] : memref<1x32xf32, #tpu.memory_space<vmem>>, vector<1x32xf32>
    %165 = vector.shape_cast %164 : vector<1x32xf32> to vector<32xf32>
    %cst_55 = arith.constant dense<0.000000e+00> : vector<16xf32>
    %166 = vector.multi_reduction <add>, %161, %cst_55 [1] : vector<16x32xf32> to vector<16xf32>
    %167 = vector.shape_cast %166 : vector<16xf32> to vector<16x1xf32>
    %cst_56 = arith.constant 3.200000e+01 : f32
    %168 = vector.broadcast %cst_56 : f32 to vector<16x1xf32>
    %169 = arith.divf %167, %168 : vector<16x1xf32>
    %170 = vector.broadcast %169 : vector<16x1xf32> to vector<16x32xf32>
    %171 = arith.subf %161, %170 : vector<16x32xf32>
    %172 = arith.mulf %171, %171 : vector<16x32xf32>
    %cst_57 = arith.constant dense<0.000000e+00> : vector<16xf32>
    %173 = vector.multi_reduction <add>, %172, %cst_57 [1] : vector<16x32xf32> to vector<16xf32>
    %174 = vector.shape_cast %173 : vector<16xf32> to vector<16x1xf32>
    %cst_58 = arith.constant 3.200000e+01 : f32
    %175 = vector.broadcast %cst_58 : f32 to vector<16x1xf32>
    %176 = arith.divf %174, %175 : vector<16x1xf32>
    %177 = vector.broadcast %169 : vector<16x1xf32> to vector<16x32xf32>
    %178 = arith.subf %161, %177 : vector<16x32xf32>
    %cst_59 = arith.constant 9.99999974E-6 : f32
    %179 = vector.broadcast %cst_59 : f32 to vector<16x1xf32>
    %180 = arith.addf %176, %179 : vector<16x1xf32>
    %181 = math.rsqrt %180 : vector<16x1xf32>
    %182 = vector.broadcast %181 : vector<16x1xf32> to vector<16x32xf32>
    %183 = arith.mulf %178, %182 : vector<16x32xf32>
    %184 = vector.shape_cast %163 : vector<32xf32> to vector<1x32xf32>
    %185 = vector.broadcast %184 : vector<1x32xf32> to vector<16x32xf32>
    %186 = arith.mulf %183, %185 : vector<16x32xf32>
    %187 = vector.shape_cast %165 : vector<32xf32> to vector<1x32xf32>
    %188 = vector.broadcast %187 : vector<1x32xf32> to vector<16x32xf32>
    %189 = arith.addf %186, %188 : vector<16x32xf32>
    %190 = arith.truncf %189 : vector<16x32xf32> to vector<16x32xbf16>
    %c0_60 = arith.constant 0 : index
    %c0_61 = arith.constant 0 : index
    %191 = vector.load %arg10[%c0_60, %c0_61] : memref<32x64xbf16, #tpu.memory_space<vmem>>, vector<32x64xbf16>
    %cst_62 = arith.constant dense<0.000000e+00> : vector<16x64xf32>
    %192 = tpu.matmul %190, %191, %cst_62 {dimension_numbers = #tpu.dot_dimension_numbers<[1], [0], [0], [1], [0, 0, 1, 1], [], []>} : vector<16x32xbf16>, vector<32x64xbf16>, vector<16x64xf32> -> vector<16x64xf32>
    %c0_63 = arith.constant 0 : index
    %c0_64 = arith.constant 0 : index
    %193 = vector.load %arg11[%c0_63, %c0_64] : memref<1x64xf32, #tpu.memory_space<vmem>>, vector<1x64xf32>
    %194 = vector.shape_cast %193 : vector<1x64xf32> to vector<64xf32>
    %195 = vector.shape_cast %194 : vector<64xf32> to vector<1x64xf32>
    %196 = vector.broadcast %195 : vector<1x64xf32> to vector<16x64xf32>
    %197 = arith.addf %192, %196 : vector<16x64xf32>
    %cst_65 = arith.constant 0.000000e+00 : f32
    %198 = vector.broadcast %cst_65 : f32 to vector<16x64xf32>
    %199 = arith.maximumf %197, %198 : vector<16x64xf32>
    %200 = arith.truncf %199 : vector<16x64xf32> to vector<16x64xbf16>
    %c0_66 = arith.constant 0 : index
    %c0_67 = arith.constant 0 : index
    %201 = vector.load %arg12[%c0_66, %c0_67] : memref<64x32xbf16, #tpu.memory_space<vmem>>, vector<64x32xbf16>
    %cst_68 = arith.constant dense<0.000000e+00> : vector<16x32xf32>
    %202 = tpu.matmul %200, %201, %cst_68 {dimension_numbers = #tpu.dot_dimension_numbers<[1], [0], [0], [1], [0, 0, 1, 1], [], []>} : vector<16x64xbf16>, vector<64x32xbf16>, vector<16x32xf32> -> vector<16x32xf32>
    %c0_69 = arith.constant 0 : index
    %c0_70 = arith.constant 0 : index
    %203 = vector.load %arg13[%c0_69, %c0_70] : memref<1x32xf32, #tpu.memory_space<vmem>>, vector<1x32xf32>
    %204 = vector.shape_cast %203 : vector<1x32xf32> to vector<32xf32>
    %205 = vector.shape_cast %204 : vector<32xf32> to vector<1x32xf32>
    %206 = vector.broadcast %205 : vector<1x32xf32> to vector<16x32xf32>
    %207 = arith.addf %202, %206 : vector<16x32xf32>
    %208 = arith.addf %207, %161 : vector<16x32xf32>
    %209 = vector.shape_cast %208 : vector<16x32xf32> to vector<2x8x32xf32>
    %c0_71 = arith.constant 0 : index
    %c0_72 = arith.constant 0 : index
    %c0_73 = arith.constant 0 : index
    %210 = vector.load %arg18[%c0_71, %c0_72, %c0_73] : memref<2x8x32xf32, #tpu.memory_space<vmem>>, vector<2x8x32xf32>
    tpu.vector_store %arg18[%c0_71, %c0_72, %c0_73], %209 {strides = array<i32>} : memref<2x8x32xf32, #tpu.memory_space<vmem>>, vector<2x8x32xf32>,
    return
  }
  func.func @transform_0(%arg0: i32) -> (i32, i32, i32) {
    %c0_i32 = arith.constant 0 : i32
    %c0_i32_0 = arith.constant 0 : i32
    %c0_i32_1 = arith.constant 0 : i32
    return %arg0, %c0_i32, %c0_i32_0 : i32, i32, i32
  }
  func.func @transform_1(%arg0: i32) -> (i32, i32) {
    %c0_i32 = arith.constant 0 : i32
    %c0_i32_0 = arith.constant 0 : i32
    %c0_i32_1 = arith.constant 0 : i32
    return %c0_i32, %c0_i32_0 : i32, i32
  }
  func.func @transform_2(%arg0: i32) -> (i32, i32) {
    %c0_i32 = arith.constant 0 : i32
    %c0_i32_0 = arith.constant 0 : i32
    %c0_i32_1 = arith.constant 0 : i32
    return %c0_i32, %c0_i32_0 : i32, i32
  }
  func.func @transform_3(%arg0: i32) -> (i32, i32) {
    %c0_i32 = arith.constant 0 : i32
    %c0_i32_0 = arith.constant 0 : i32
    %c0_i32_1 = arith.constant 0 : i32
    return %c0_i32, %c0_i32_0 : i32, i32
  }
  func.func @transform_4(%arg0: i32) -> (i32, i32) {
    %c0_i32 = arith.constant 0 : i32
    %c0_i32_0 = arith.constant 0 : i32
    %c0_i32_1 = arith.constant 0 : i32
    return %c0_i32, %c0_i32_0 : i32, i32
  }
  func.func @transform_5(%arg0: i32) -> (i32, i32) {
    %c0_i32 = arith.constant 0 : i32
    %c0_i32_0 = arith.constant 0 : i32
    %c0_i32_1 = arith.constant 0 : i32
    return %c0_i32, %c0_i32_0 : i32, i32
  }
  func.func @transform_6(%arg0: i32) -> (i32, i32) {
    %c0_i32 = arith.constant 0 : i32
    %c0_i32_0 = arith.constant 0 : i32
    %c0_i32_1 = arith.constant 0 : i32
    return %c0_i32, %c0_i32_0 : i32, i32
  }
  func.func @transform_7(%arg0: i32) -> (i32, i32) {
    %c0_i32 = arith.constant 0 : i32
    %c0_i32_0 = arith.constant 0 : i32
    %c0_i32_1 = arith.constant 0 : i32
    return %c0_i32, %c0_i32_0 : i32, i32
  }
  func.func @transform_8(%arg0: i32) -> (i32, i32) {
    %c0_i32 = arith.constant 0 : i32
    %c0_i32_0 = arith.constant 0 : i32
    %c0_i32_1 = arith.constant 0 : i32
    return %c0_i32, %c0_i32_0 : i32, i32
  }
  func.func @transform_9(%arg0: i32) -> (i32, i32) {
    %c0_i32 = arith.constant 0 : i32
    %c0_i32_0 = arith.constant 0 : i32
    %c0_i32_1 = arith.constant 0 : i32
    return %c0_i32, %c0_i32_0 : i32, i32
  }
  func.func @transform_10(%arg0: i32) -> (i32, i32) {
    %c0_i32 = arith.constant 0 : i32
    %c0_i32_0 = arith.constant 0 : i32
    %c0_i32_1 = arith.constant 0 : i32
    return %c0_i32, %c0_i32_0 : i32, i32
  }
  func.func @transform_11(%arg0: i32) -> (i32, i32) {
    %c0_i32 = arith.constant 0 : i32
    %c0_i32_0 = arith.constant 0 : i32
    %c0_i32_1 = arith.constant 0 : i32
    return %c0_i32, %c0_i32_0 : i32, i32
  }
  func.func @transform_12(%arg0: i32) -> (i32, i32) {
    %c0_i32 = arith.constant 0 : i32
    %c0_i32_0 = arith.constant 0 : i32
    %c0_i32_1 = arith.constant 0 : i32
    return %c0_i32, %c0_i32_0 : i32, i32
  }
  func.func @transform_13(%arg0: i32) -> (i32, i32) {
    %c0_i32 = arith.constant 0 : i32
    %c0_i32_0 = arith.constant 0 : i32
    %c0_i32_1 = arith.constant 0 : i32
    return %c0_i32, %c0_i32_0 : i32, i32
  }
  func.func @transform_14(%arg0: i32) -> (i32, i32) {
    %c0_i32 = arith.constant 0 : i32
    %c0_i32_0 = arith.constant 0 : i32
    %c0_i32_1 = arith.constant 0 : i32
    return %c0_i32, %c0_i32_0 : i32, i32
  }
  func.func @transform_15(%arg0: i32) -> (i32, i32) {
    %c0_i32 = arith.constant 0 : i32
    %c0_i32_0 = arith.constant 0 : i32
    %c0_i32_1 = arith.constant 0 : i32
    return %c0_i32, %c0_i32_0 : i32, i32
  }
  func.func @transform_16(%arg0: i32) -> (i32, i32) {
    %c0_i32 = arith.constant 0 : i32
    %c0_i32_0 = arith.constant 0 : i32
    %c0_i32_1 = arith.constant 0 : i32
    return %c0_i32, %c0_i32_0 : i32, i32
  }
  func.func @transform_17(%arg0: i32) -> (i32, i32, i32) {
    %c0_i32 = arith.constant 0 : i32
    %c0_i32_0 = arith.constant 0 : i32
    %c0_i32_1 = arith.constant 0 : i32
    return %arg0, %c0_i32, %c0_i32_0 : i32, i32, i32
  }
  func.func @transform_18(%arg0: i32) -> (i32, i32, i32, i32) {
    %c0_i32 = arith.constant 0 : i32
    %c0_i32_0 = arith.constant 0 : i32
    %c0_i32_1 = arith.constant 0 : i32
    %c0_i32_2 = arith.constant 0 : i32
    return %arg0, %c0_i32, %c0_i32_0, %c0_i32_1 : i32, i32, i32, i32
  }
}

</mosaic_0001>

<llo_original>
// kernel: tpu_custom_call.1
$region0: #{tpu_custom_call.1}
  #allocation0 [shape = 'u32[]', space=smem, size = 0x4, offset = 0x4, fixed_abs, tag = 'smem constant byte address 0x4 - core index']
  #allocation1 [shape = 'u32[144,128]{1,0:T(1,128)}', space=vmem, size = 0x12000, scoped, tag = 'internal scratch']
  %s0 = inlined_call_operand.vmem [shape: f32[2,8,32], index: 0, kind: input, shape index: {}]
  %s1 = inlined_call_operand.vmem [shape: bf16[32,32], index: 1, kind: input, shape index: {}]
  %s2 = inlined_call_operand.vmem [shape: f32[1,32], index: 2, kind: input, shape index: {}]
  %s3 = inlined_call_operand.vmem [shape: bf16[32,32], index: 3, kind: input, shape index: {}]
  %s4 = inlined_call_operand.vmem [shape: f32[1,32], index: 4, kind: input, shape index: {}]
  %s5 = inlined_call_operand.hbm [shape: bf16[32,32], index: 5, kind: input, shape index: {}]
  %s6 = inlined_call_operand.hbm [shape: f32[1,32], index: 6, kind: input, shape index: {}]
  %s7 = inlined_call_operand.hbm [shape: bf16[32,32], index: 7, kind: input, shape index: {}]
  %s8 = inlined_call_operand.hbm [shape: f32[1,32], index: 8, kind: input, shape index: {}]
  %s9 = inlined_call_operand.vmem [shape: bf16[32,64], index: 9, kind: input, shape index: {}]
  %s10 = inlined_call_operand.vmem [shape: f32[1,64], index: 10, kind: input, shape index: {}]
  %s11 = inlined_call_operand.vmem [shape: bf16[64,32], index: 11, kind: input, shape index: {}]
  %s12 = inlined_call_operand.vmem [shape: f32[1,32], index: 12, kind: input, shape index: {}]
  %s13 = inlined_call_operand.vmem [shape: f32[1,32], index: 13, kind: input, shape index: {}]
  %s14 = inlined_call_operand.vmem [shape: f32[1,32], index: 14, kind: input, shape index: {}]
  %s15 = inlined_call_operand.vmem [shape: f32[1,32], index: 15, kind: input, shape index: {}]
  %s16 = inlined_call_operand.vmem [shape: f32[1,32], index: 16, kind: input, shape index: {}]
  %s17 = inlined_call_operand.hbm [shape: f32[2,8,32], index: 17, kind: output, shape index: {0}]
  %s18 = inlined_call_operand.hbm [shape: f32[2,4,8,8], index: 18, kind: output, shape index: {1}]
  %19 = xla_tuple %s17, %s18
  %s20 = sld [smem:[#allocation0]]
  $region102: #{tpu_custom_call.1} parent=0
    _
  %s22 = ssub.s32 1, %s20
  %s23 = scalar_select 0, %s22, %s20
  $region1: #{tpu_custom_call.1} parent=0
    #allocation2 [shape = 'u8[8192]{0}', space=vmem, size = 0x2000, scoped, tag = 'input window, operand 5, single buffered']
    #allocation3 [shape = 's32[1]{0}', space=sflag, size = 0x4, scoped, tag = 'scoped memory for tpu_custom_call.1']
    #allocation4 [shape = 's32[1]{0}', space=sflag, size = 0x4, scoped, tag = 'scoped memory for tpu_custom_call.1']
    #allocation5 [shape = 'u8[512]{0}', space=vmem, size = 0x400, scoped, tag = 'input window, operand 6, single buffered']
    #allocation6 [shape = 's32[1]{0}', space=sflag, size = 0x4, scoped, tag = 'scoped memory for tpu_custom_call.1']
    #allocation7 [shape = 'u8[8192]{0}', space=vmem, size = 0x2000, scoped, tag = 'input window, operand 7, single buffered']
    #allocation8 [shape = 'u8[512]{0}', space=vmem, size = 0x400, scoped, tag = 'input window, operand 8, single buffered']
    #allocation9 [shape = 's32[1]{0}', space=sflag, size = 0x4, scoped, tag = 'scoped memory for tpu_custom_call.1']
    #allocation10 [shape = 'u8[8192]{0}', space=vmem, size = 0x2000, scoped, tag = 'output window, operand 0, single buffered']
    #allocation11 [shape = 'u8[32768]{0}', space=vmem, size = 0x8000, scoped, tag = 'output window, operand 1, single buffered']
    #allocation12 [shape = 's32[1]{0}', space=sflag, size = 0x4, scoped, tag = 'scoped memory for tpu_custom_call.1']
    %24 = vsyncpa [#allocation3], 0
    %25 = vsyncpa [#allocation6], 0
    %26 = vsyncpa [#allocation9], 0
    %27 = vsyncpa [#allocation4], 0
    %28 = vsyncpa [#allocation12], 0
    // Predicated region
    $region2: #{tpu_custom_call.1} parent=1 // pred_check
      _
    $region3: #{tpu_custom_call.1} parent=1 // pred_check_branch
      %30 = sbr.rel (0) target = $region5
    $region4: #{tpu_custom_call.1} parent=1 // pred_region
      _
    $region5: #{tpu_custom_call.1} parent=1 // pred_fallthru
      _
    // Predicated region
    $region6: #{tpu_custom_call.1} parent=1 // pred_check
      _
    $region7: #{tpu_custom_call.1} parent=1 // pred_check_branch
      %32 = sbr.rel (0) target = $region9
    $region8: #{tpu_custom_call.1} parent=1 // pred_region
      _
    $region9: #{tpu_custom_call.1} parent=1 // pred_fallthru
      _
    // Predicated region
    $region10: #{tpu_custom_call.1} parent=1 // pred_check
      _
    $region11: #{tpu_custom_call.1} parent=1 // pred_check_branch
      %34 = sbr.rel (0) target = $region13
    $region12: #{tpu_custom_call.1} parent=1 // pred_region
      _
    $region13: #{tpu_custom_call.1} parent=1 // pred_fallthru
      _
    // Predicated region
    $region14: #{tpu_custom_call.1} parent=1 // pred_check
      _
    $region15: #{tpu_custom_call.1} parent=1 // pred_check_branch
      %36 = sbr.rel (0) target = $region17
    $region16: #{tpu_custom_call.1} parent=1 // pred_region
      _
    $region17: #{tpu_custom_call.1} parent=1 // pred_fallthru
      _
    // Predicated region
    $region18: #{tpu_custom_call.1} parent=1 // pred_check
      _
    $region19: #{tpu_custom_call.1} parent=1 // pred_check_branch
      %38 = sbr.rel (0) target = $region21
    $region20: #{tpu_custom_call.1} parent=1 // pred_region
      _
    $region21: #{tpu_custom_call.1} parent=1 // pred_fallthru
      _
    // Predicated region
    $region22: #{tpu_custom_call.1} parent=1 // pred_check
      _
    $region23: #{tpu_custom_call.1} parent=1 // pred_check_branch
      %40 = sbr.rel (0) target = $region25
    $region24: #{tpu_custom_call.1} parent=1 // pred_region
      %s42 = ssub.s32 256, 256
      %43 = vsyncadd [#allocation3], %s42
      %s44 = sshll.u32 [#allocation2], 4
      %s45 = int_to_ptr.vmem [resolvable:$true] %s44
      %50 = dma.hbm_to_vmem [thread:$0]  %s5, 256, %s45, [#allocation3], 64, 64, 4
    $region25: #{tpu_custom_call.1} parent=1 // pred_fallthru
      _
    // Predicated region
    $region26: #{tpu_custom_call.1} parent=1 // pred_check
      _
    $region27: #{tpu_custom_call.1} parent=1 // pred_check_branch
      %52 = sbr.rel (0) target = $region29
    $region28: #{tpu_custom_call.1} parent=1 // pred_region
      %s54 = ssub.s32 16, 16
      %55 = vsyncadd [#allocation6], %s54
      %s57 = sshll.u32 [#allocation5], 4
      %s58 = int_to_ptr.vmem [resolvable:$true] %s57
      %60 = dma.hbm_to_vmem [thread:$0]  %s6, 16, %s58, [#allocation6]
    $region29: #{tpu_custom_call.1} parent=1 // pred_fallthru
      _
    // Predicated region
    $region30: #{tpu_custom_call.1} parent=1 // pred_check
      _
    $region31: #{tpu_custom_call.1} parent=1 // pred_check_branch
      %62 = sbr.rel (0) target = $region33
    $region32: #{tpu_custom_call.1} parent=1 // pred_region
      %s64 = ssub.s32 256, 256
      %65 = vsyncadd [#allocation6], %s64
      %s66 = sshll.u32 [#allocation7], 4
      %s67 = int_to_ptr.vmem [resolvable:$true] %s66
      %72 = dma.hbm_to_vmem [thread:$0]  %s7, 256, %s67, [#allocation6], 64, 64, 4
    $region33: #{tpu_custom_call.1} parent=1 // pred_fallthru
      _
    // Predicated region
    $region34: #{tpu_custom_call.1} parent=1 // pred_check
      _
    $region35: #{tpu_custom_call.1} parent=1 // pred_check_branch
      %74 = sbr.rel (0) target = $region37
    $region36: #{tpu_custom_call.1} parent=1 // pred_region
      %s76 = ssub.s32 16, 16
      %77 = vsyncadd [#allocation9], %s76
      %s79 = sshll.u32 [#allocation8], 4
      %s80 = int_to_ptr.vmem [resolvable:$true] %s79
      %82 = dma.hbm_to_vmem [thread:$0]  %s8, 16, %s80, [#allocation9]
    $region37: #{tpu_custom_call.1} parent=1 // pred_fallthru
      _
    // Predicated region
    $region38: #{tpu_custom_call.1} parent=1 // pred_check
      _
    $region39: #{tpu_custom_call.1} parent=1 // pred_check_branch
      %84 = sbr.rel (0) target = $region41
    $region40: #{tpu_custom_call.1} parent=1 // pred_region
      _
    $region41: #{tpu_custom_call.1} parent=1 // pred_fallthru
      _
    // Predicated region
    $region42: #{tpu_custom_call.1} parent=1 // pred_check
      _
    $region43: #{tpu_custom_call.1} parent=1 // pred_check_branch
      %86 = sbr.rel (0) target = $region45
    $region44: #{tpu_custom_call.1} parent=1 // pred_region
      _
    $region45: #{tpu_custom_call.1} parent=1 // pred_fallthru
      _
    // Predicated region
    $region46: #{tpu_custom_call.1} parent=1 // pred_check
      _
    $region47: #{tpu_custom_call.1} parent=1 // pred_check_branch
      %88 = sbr.rel (0) target = $region49
    $region48: #{tpu_custom_call.1} parent=1 // pred_region
      _
    $region49: #{tpu_custom_call.1} parent=1 // pred_fallthru
      _
    // Predicated region
    $region50: #{tpu_custom_call.1} parent=1 // pred_check
      _
    $region51: #{tpu_custom_call.1} parent=1 // pred_check_branch
      %90 = sbr.rel (0) target = $region53
    $region52: #{tpu_custom_call.1} parent=1 // pred_region
      _
    $region53: #{tpu_custom_call.1} parent=1 // pred_fallthru
      _
    // Predicated region
    $region54: #{tpu_custom_call.1} parent=1 // pred_check
      _
    $region55: #{tpu_custom_call.1} parent=1 // pred_check_branch
      %92 = sbr.rel (0) target = $region57
    $region56: #{tpu_custom_call.1} parent=1 // pred_region
      _
    $region57: #{tpu_custom_call.1} parent=1 // pred_fallthru
      _
    // Predicated region
    $region58: #{tpu_custom_call.1} parent=1 // pred_check
      _
    $region59: #{tpu_custom_call.1} parent=1 // pred_check_branch
      %94 = sbr.rel (0) target = $region61
    $region60: #{tpu_custom_call.1} parent=1 // pred_region
      _
    $region61: #{tpu_custom_call.1} parent=1 // pred_fallthru
      _
    // Predicated region
    $region62: #{tpu_custom_call.1} parent=1 // pred_check
      _
    $region63: #{tpu_custom_call.1} parent=1 // pred_check_branch
      %96 = sbr.rel (0) target = $region65
    $region64: #{tpu_custom_call.1} parent=1 // pred_region
      _
    $region65: #{tpu_custom_call.1} parent=1 // pred_fallthru
      _
    // Predicated region
    $region66: #{tpu_custom_call.1} parent=1 // pred_check
      _
    $region67: #{tpu_custom_call.1} parent=1 // pred_check_branch
      %98 = sbr.rel (0) target = $region69
    $region68: #{tpu_custom_call.1} parent=1 // pred_region
      _
    $region69: #{tpu_custom_call.1} parent=1 // pred_fallthru
      _
    // Predicated region
    $region70: #{tpu_custom_call.1} parent=1 // pred_check
      _
    $region71: #{tpu_custom_call.1} parent=1 // pred_check_branch
      %100 = sbr.rel (0) target = $region73
    $region72: #{tpu_custom_call.1} parent=1 // pred_region
      %101 = dma.done [#allocation3], 256
    $region73: #{tpu_custom_call.1} parent=1 // pred_fallthru
      _
    // Predicated region
    $region74: #{tpu_custom_call.1} parent=1 // pred_check
      _
    $region75: #{tpu_custom_call.1} parent=1 // pred_check_branch
      %103 = sbr.rel (0) target = $region77
    $region76: #{tpu_custom_call.1} parent=1 // pred_region
      %104 = dma.done [#allocation6], 16
    $region77: #{tpu_custom_call.1} parent=1 // pred_fallthru
      _
    // Predicated region
    $region78: #{tpu_custom_call.1} parent=1 // pred_check
      _
    $region79: #{tpu_custom_call.1} parent=1 // pred_check_branch
      %106 = sbr.rel (0) target = $region81
    $region80: #{tpu_custom_call.1} parent=1 // pred_region
      %107 = dma.done [#allocation6], 256
    $region81: #{tpu_custom_call.1} parent=1 // pred_fallthru
      _
    // Predicated region
    $region82: #{tpu_custom_call.1} parent=1 // pred_check
      _
    $region83: #{tpu_custom_call.1} parent=1 // pred_check_branch
      %109 = sbr.rel (0) target = $region85
    $region84: #{tpu_custom_call.1} parent=1 // pred_region
      %110 = dma.done [#allocation9], 16
    $region85: #{tpu_custom_call.1} parent=1 // pred_fallthru
      _
    %v112 = vld [vmem:[%s0] sm:$0xff]
    %v113 = vld [vmem:[%s0 + $0x8] sm:$0xff]
    %v114 = vld [vmem:[%s13] sm:$0x1]
    %v115 = vld [vmem:[%s14] sm:$0x1]
    %vm116 = vcmask 261120
    %v117 = vsel %vm116, %v112, 0.0
    %118 = vadd.xlane.f32.xlu0 %v117
    %v119 = vpop.xlane.xlu0 %118
    %v120 = vsel %vm116, %v113, 0.0
    %121 = vadd.xlane.f32.xlu0 %v120
    %v122 = vpop.xlane.xlu0 %121
    %v123 = vrcp.pop 32.0
    %v124 = vmul.f32 %v119, %v123
    %v125 = vmul.f32 %v122, %v123
    %v126 = vsub.f32 %v112, %v124
    %v127 = vsub.f32 %v113, %v125
    %v128 = vmul.f32 %v126, %v126
    %v129 = vmul.f32 %v127, %v127
    %v130 = vsel %vm116, %v128, 0.0
    %131 = vadd.xlane.f32.xlu0 %v130
    %v132 = vpop.xlane.xlu0 %131
    %v133 = vsel %vm116, %v129, 0.0
    %134 = vadd.xlane.f32.xlu0 %v133
    %v135 = vpop.xlane.xlu0 %134
    %v136 = vmul.f32 %v132, %v123
    %v137 = vmul.f32 %v135, %v123
    %v138 = vadd.f32 %v136, 1e-05
    %v139 = vadd.f32 %v137, 1e-05
    %v140 = vrsqrt.pop %v138
    %v141 = vrsqrt.pop %v139
    %v142 = vmul.f32 %v126, %v140
    %v143 = vmul.f32 %v127, %v141
    %v145 = vlaneseq
    %v146 = vshrl.u32 %v145, 7
    %v147 = vsub.s32 0, %v146
    %v148 = vrot.slane %v114, %v147
    %v150 = vmul.f32 %v142, %v148
    %v151 = vmul.f32 %v143, %v148
    %v153 = vlaneseq
    %v154 = vshrl.u32 %v153, 7
    %v155 = vsub.s32 0, %v154
    %v156 = vrot.slane %v115, %v155
    %v158 = vadd.f32 %v150, %v156
    %v159 = vadd.f32 %v151, %v156
    %v160 = vpack.c.bf16 %v159, %v158
    %v161 = vld [vmem:[%s1] sm:$0xf]
    %v162 = vld [vmem:[%s1 + $0x4] sm:$0xf]
    %v163 = vld [vmem:[%s1 + $0x8] sm:$0xf]
    %v164 = vld [vmem:[%s1 + $0xc] sm:$0xf]
    %v165 = vld [vmem:[%s2] sm:$0x1]
    %v167 = vlaneseq
    %v168 = vshrl.u32 %v167, 7
    %v169 = vsub.s32 0, %v168
    %v170 = vrot.slane %v165, %v169
    %v176 = vunpack.c.l.b16 %v161
    %v177 = vunpack.c.l.b16 %v162
    %v178 = vunpack.c.l.b16 %v163
    %v179 = vunpack.c.l.b16 %v164
    %v180 = vpack.c.b16 %v177, %v176
    %v181 = vpack.c.b16 %v179, %v178
    %v185 = vsel %vm116, %v160, 0
    %187 = vmatprep.subr.bf16.mxu0 0
    %188 = vmatpush1.bf16.msra.mxu0 %v180
    %189 = vmatprep.subr.bf16.mxu0 0
    %190 = vmatpush1.bf16.msra.mxu0 %v181
    %191 = vmatprep.subr.bf16.mxu0 0
    %192 = vmatpush1.bf16.msra.mxu0 0
    %193 = vmatprep.subr.bf16.mxu0 0
    %194 = vmatpush1.bf16.msra.mxu0 0
    %195 = vmatprep.subr.bf16.mxu0 0
    %196 = vmatpush1.bf16.msra.mxu0 0
    %197 = vmatprep.subr.bf16.mxu0 0
    %198 = vmatpush1.bf16.msra.mxu0 0
    %199 = vmatprep.subr.bf16.mxu0 0
    %200 = vmatpush1.bf16.msra.mxu0 0
    %201 = vmatprep.subr.bf16.mxu0 0
    %202 = vmatpush1.bf16.msra.mxu0 0
    %203 = vmatprep.subr.bf16.mxu0 0
    %204 = vmatpush1.bf16.msra.mxu0 0
    %205 = vmatprep.subr.bf16.mxu0 0
    %206 = vmatpush1.bf16.msra.mxu0 0
    %207 = vmatprep.subr.bf16.mxu0 0
    %208 = vmatpush1.bf16.msra.mxu0 0
    %209 = vmatprep.subr.bf16.mxu0 0
    %210 = vmatpush1.bf16.msra.mxu0 0
    %211 = vmatprep.subr.bf16.mxu0 0
    %212 = vmatpush1.bf16.msra.mxu0 0
    %213 = vmatprep.subr.bf16.mxu0 0
    %214 = vmatpush1.bf16.msra.mxu0 0
    %215 = vmatprep.subr.bf16.mxu0 0
    %216 = vmatpush1.bf16.msra.mxu0 0
    %217 = vmatprep.subr.bf16.mxu0 0
    %218 = vmatpush1.bf16.msra.mxu0 0
    %219 = vmatprep.mubr.bf16.mxu0 0
    %220 = vmatmul.mubr.bf16.gmra.mrb[0].mxu0 %v185
    %v221 = vpop.f32.mrb[0].mxu0
    %v222 = vadd.f32 %v170, %v221
    %v223 = vpop.f32.mrb[0].mxu0
    %v224 = vpop.f32.mrb[0].mxu0
    %v225 = vadd.f32 %v170, %v224
    %v226 = vpop.f32.mrb[0].mxu0
    %227 = vdwg.mxu0
    %v228 = vld [vmem:[%s3] sm:$0xf]
    %v229 = vld [vmem:[%s3 + $0x4] sm:$0xf]
    %v230 = vld [vmem:[%s3 + $0x8] sm:$0xf]
    %v231 = vld [vmem:[%s3 + $0xc] sm:$0xf]
    %v232 = vld [vmem:[%s4] sm:$0x1]
    %v234 = vlaneseq
    %v235 = vshrl.u32 %v234, 7
    %v236 = vsub.s32 0, %v235
    %v237 = vrot.slane %v232, %v236
    %v243 = vunpack.c.l.b16 %v228
    %v244 = vunpack.c.l.b16 %v229
    %v245 = vunpack.c.l.b16 %v230
    %v246 = vunpack.c.l.b16 %v231
    %v247 = vpack.c.b16 %v244, %v243
    %v248 = vpack.c.b16 %v246, %v245
    %251 = vmatprep.subr.bf16.mxu0 0
    %252 = vmatpush1.bf16.msra.mxu0 %v247
    %253 = vmatprep.subr.bf16.mxu0 0
    %254 = vmatpush1.bf16.msra.mxu0 %v248
    %255 = vmatprep.subr.bf16.mxu0 0
    %256 = vmatpush1.bf16.msra.mxu0 0
    %257 = vmatprep.subr.bf16.mxu0 0
    %258 = vmatpush1.bf16.msra.mxu0 0
    %259 = vmatprep.subr.bf16.mxu0 0
    %260 = vmatpush1.bf16.msra.mxu0 0
    %261 = vmatprep.subr.bf16.mxu0 0
    %262 = vmatpush1.bf16.msra.mxu0 0
    %263 = vmatprep.subr.bf16.mxu0 0
    %264 = vmatpush1.bf16.msra.mxu0 0
    %265 = vmatprep.subr.bf16.mxu0 0
    %266 = vmatpush1.bf16.msra.mxu0 0
    %267 = vmatprep.subr.bf16.mxu0 0
    %268 = vmatpush1.bf16.msra.mxu0 0
    %269 = vmatprep.subr.bf16.mxu0 0
    %270 = vmatpush1.bf16.msra.mxu0 0
    %271 = vmatprep.subr.bf16.mxu0 0
    %272 = vmatpush1.bf16.msra.mxu0 0
    %273 = vmatprep.subr.bf16.mxu0 0
    %274 = vmatpush1.bf16.msra.mxu0 0
    %275 = vmatprep.subr.bf16.mxu0 0
    %276 = vmatpush1.bf16.msra.mxu0 0
    %277 = vmatprep.subr.bf16.mxu0 0
    %278 = vmatpush1.bf16.msra.mxu0 0
    %279 = vmatprep.subr.bf16.mxu0 0
    %280 = vmatpush1.bf16.msra.mxu0 0
    %281 = vmatprep.subr.bf16.mxu0 0
    %282 = vmatpush1.bf16.msra.mxu0 0
    %283 = vmatprep.mubr.bf16.mxu0 0
    %284 = vmatmul.mubr.bf16.gmra.mrb[0].mxu0 %v185
    %v285 = vpop.f32.mrb[0].mxu0
    %v286 = vadd.f32 %v237, %v285
    %v287 = vpop.f32.mrb[0].mxu0
    %v288 = vpop.f32.mrb[0].mxu0
    %v289 = vadd.f32 %v237, %v288
    %v290 = vpop.f32.mrb[0].mxu0
    %291 = vdwg.mxu0
    %v292 = vld [vmem:[#allocation2] sm:$0xf]
    %v293 = vld [vmem:[#allocation2 + $0x4] sm:$0xf]
    %v294 = vld [vmem:[#allocation2 + $0x8] sm:$0xf]
    %v295 = vld [vmem:[#allocation2 + $0xc] sm:$0xf]
    %v296 = vld [vmem:[#allocation5] sm:$0x1]
    %v298 = vlaneseq
    %v299 = vshrl.u32 %v298, 7
    %v300 = vsub.s32 0, %v299
    %v301 = vrot.slane %v296, %v300
    %v307 = vunpack.c.l.b16 %v292
    %v308 = vunpack.c.l.b16 %v293
    %v309 = vunpack.c.l.b16 %v294
    %v310 = vunpack.c.l.b16 %v295
    %v311 = vpack.c.b16 %v308, %v307
    %v312 = vpack.c.b16 %v310, %v309
    %315 = vmatprep.subr.bf16.mxu0 0
    %316 = vmatpush1.bf16.msra.mxu0 %v311
    %317 = vmatprep.subr.bf16.mxu0 0
    %318 = vmatpush1.bf16.msra.mxu0 %v312
    %319 = vmatprep.subr.bf16.mxu0 0
    %320 = vmatpush1.bf16.msra.mxu0 0
    %321 = vmatprep.subr.bf16.mxu0 0
    %322 = vmatpush1.bf16.msra.mxu0 0
    %323 = vmatprep.subr.bf16.mxu0 0
    %324 = vmatpush1.bf16.msra.mxu0 0
    %325 = vmatprep.subr.bf16.mxu0 0
    %326 = vmatpush1.bf16.msra.mxu0 0
    %327 = vmatprep.subr.bf16.mxu0 0
    %328 = vmatpush1.bf16.msra.mxu0 0
    %329 = vmatprep.subr.bf16.mxu0 0
    %330 = vmatpush1.bf16.msra.mxu0 0
    %331 = vmatprep.subr.bf16.mxu0 0
    %332 = vmatpush1.bf16.msra.mxu0 0
    %333 = vmatprep.subr.bf16.mxu0 0
    %334 = vmatpush1.bf16.msra.mxu0 0
    %335 = vmatprep.subr.bf16.mxu0 0
    %336 = vmatpush1.bf16.msra.mxu0 0
    %337 = vmatprep.subr.bf16.mxu0 0
    %338 = vmatpush1.bf16.msra.mxu0 0
    %339 = vmatprep.subr.bf16.mxu0 0
    %340 = vmatpush1.bf16.msra.mxu0 0
    %341 = vmatprep.subr.bf16.mxu0 0
    %342 = vmatpush1.bf16.msra.mxu0 0
    %343 = vmatprep.subr.bf16.mxu0 0
    %344 = vmatpush1.bf16.msra.mxu0 0
    %345 = vmatprep.subr.bf16.mxu0 0
    %346 = vmatpush1.bf16.msra.mxu0 0
    %347 = vmatprep.mubr.bf16.mxu0 0
    %348 = vmatmul.mubr.bf16.gmra.mrb[0].mxu0 %v185
    %v349 = vpop.f32.mrb[0].mxu0
    %v350 = vadd.f32 %v301, %v349
    %v351 = vpop.f32.mrb[0].mxu0
    %v352 = vpop.f32.mrb[0].mxu0
    %v353 = vadd.f32 %v301, %v352
    %v354 = vpop.f32.mrb[0].mxu0
    %355 = vdwg.mxu0
    %v356 = vmul.f32 %v222, 0.35355338
    %v357 = vmul.f32 %v225, 0.35355338
    %v358 = vpack.c.bf16 %v356, %v356
    %v359 = vpack.c.bf16 %v357, %v357
    %v360 = vpack.c.bf16 %v286, %v286
    %v361 = vpack.c.bf16 %v289, %v289
    %v362 = vpack.c.bf16 %v350, %v350
    %v363 = vpack.c.bf16 %v353, %v353
    %vm364 = vcmask 64512
    %v366 = vsel %vm364, %v358, 0
    %v369 = vsel %vm364, %v360, 0
    %371 = vmatprep.subr.bf16.mxu0 0
    %372 = vmatpush1.bf16.xpose.msra.mxu0 %v369
    %373 = vmatprep.subr.bf16.mxu0 0
    %374 = vmatpush1.bf16.xpose.msra.mxu0 0
    %375 = vmatprep.subr.bf16.mxu0 0
    %376 = vmatpush1.bf16.xpose.msra.mxu0 0
    %377 = vmatprep.subr.bf16.mxu0 0
    %378 = vmatpush1.bf16.xpose.msra.mxu0 0
    %379 = vmatprep.subr.bf16.mxu0 0
    %380 = vmatpush1.bf16.xpose.msra.mxu0 0
    %381 = vmatprep.subr.bf16.mxu0 0
    %382 = vmatpush1.bf16.xpose.msra.mxu0 0
    %383 = vmatprep.subr.bf16.mxu0 0
    %384 = vmatpush1.bf16.xpose.msra.mxu0 0
    %385 = vmatprep.subr.bf16.mxu0 0
    %386 = vmatpush1.bf16.xpose.msra.mxu0 0
    %387 = vmatprep.subr.bf16.mxu0 0
    %388 = vmatpush1.bf16.xpose.msra.mxu0 0
    %389 = vmatprep.subr.bf16.mxu0 0
    %390 = vmatpush1.bf16.xpose.msra.mxu0 0
    %391 = vmatprep.subr.bf16.mxu0 0
    %392 = vmatpush1.bf16.xpose.msra.mxu0 0
    %393 = vmatprep.subr.bf16.mxu0 0
    %394 = vmatpush1.bf16.xpose.msra.mxu0 0
    %395 = vmatprep.subr.bf16.mxu0 0
    %396 = vmatpush1.bf16.xpose.msra.mxu0 0
    %397 = vmatprep.subr.bf16.mxu0 0
    %398 = vmatpush1.bf16.xpose.msra.mxu0 0
    %399 = vmatprep.subr.bf16.mxu0 0
    %400 = vmatpush1.bf16.xpose.msra.mxu0 0
    %401 = vmatprep.subr.bf16.mxu0 0
    %402 = vmatpush1.bf16.xpose.msra.mxu0 0
    %403 = vmatprep.mubr.bf16.mxu0 0
    %404 = vmatmul.mubr.bf16.gmra.mrb[0].mxu0 %v366
    %v405 = vpop.f32.mrb[0].mxu0
    %v406 = vadd.f32 0.0, %v405
    %v407 = vpop.f32.mrb[0].mxu0
    %v408 = vpop.f32.mrb[0].mxu0
    %v409 = vpop.f32.mrb[0].mxu0
    %410 = vdwg.mxu0
    %v412 = vsel %vm364, %v359, 0
    %v415 = vsel %vm364, %v361, 0
    %417 = vmatprep.subr.bf16.mxu0 0
    %418 = vmatpush1.bf16.xpose.msra.mxu0 %v415
    %419 = vmatprep.subr.bf16.mxu0 0
    %420 = vmatpush1.bf16.xpose.msra.mxu0 0
    %421 = vmatprep.subr.bf16.mxu0 0
    %422 = vmatpush1.bf16.xpose.msra.mxu0 0
    %423 = vmatprep.subr.bf16.mxu0 0
    %424 = vmatpush1.bf16.xpose.msra.mxu0 0
    %425 = vmatprep.subr.bf16.mxu0 0
    %426 = vmatpush1.bf16.xpose.msra.mxu0 0
    %427 = vmatprep.subr.bf16.mxu0 0
    %428 = vmatpush1.bf16.xpose.msra.mxu0 0
    %429 = vmatprep.subr.bf16.mxu0 0
    %430 = vmatpush1.bf16.xpose.msra.mxu0 0
    %431 = vmatprep.subr.bf16.mxu0 0
    %432 = vmatpush1.bf16.xpose.msra.mxu0 0
    %433 = vmatprep.subr.bf16.mxu0 0
    %434 = vmatpush1.bf16.xpose.msra.mxu0 0
    %435 = vmatprep.subr.bf16.mxu0 0
    %436 = vmatpush1.bf16.xpose.msra.mxu0 0
    %437 = vmatprep.subr.bf16.mxu0 0
    %438 = vmatpush1.bf16.xpose.msra.mxu0 0
    %439 = vmatprep.subr.bf16.mxu0 0
    %440 = vmatpush1.bf16.xpose.msra.mxu0 0
    %441 = vmatprep.subr.bf16.mxu0 0
    %442 = vmatpush1.bf16.xpose.msra.mxu0 0
    %443 = vmatprep.subr.bf16.mxu0 0
    %444 = vmatpush1.bf16.xpose.msra.mxu0 0
    %445 = vmatprep.subr.bf16.mxu0 0
    %446 = vmatpush1.bf16.xpose.msra.mxu0 0
    %447 = vmatprep.subr.bf16.mxu0 0
    %448 = vmatpush1.bf16.xpose.msra.mxu0 0
    %449 = vmatprep.mubr.bf16.mxu0 0
    %450 = vmatmul.mubr.bf16.gmra.mrb[0].mxu0 %v412
    %v451 = vpop.f32.mrb[0].mxu0
    %v452 = vadd.f32 0.0, %v451
    %v453 = vpop.f32.mrb[0].mxu0
    %v454 = vpop.f32.mrb[0].mxu0
    %v455 = vpop.f32.mrb[0].mxu0
    %456 = vdwg.mxu0
    %v457 = vsel %vm364, %v406, -inf
    %458 = vmax.xlane.f32.xlu0 %v457
    %v459 = vpop.xlane.xlu0 %458
    %v460 = vsel %vm364, %v452, -inf
    %461 = vmax.xlane.f32.xlu0 %v460
    %v462 = vpop.xlane.xlu0 %461
    %v463 = vsub.f32 %v406, %v459
    %v464 = vsub.f32 %v452, %v462
    %v465 = vmul.f32 %v463, 1.442695
    %v466 = vpow.pop %v465
    %v467 = vmul.f32 %v464, 1.442695
    %v468 = vpow.pop %v467
    %v469 = vsel %vm364, %v466, 0.0
    %470 = vadd.xlane.f32.xlu0 %v469
    %v471 = vpop.xlane.xlu0 %470
    %v472 = vsel %vm364, %v468, 0.0
    %473 = vadd.xlane.f32.xlu0 %v472
    %v474 = vpop.xlane.xlu0 %473
    %v475 = vrcp.pop %v471
    %v476 = vrcp.pop %v474
    %v477 = vmul.f32 %v466, %v475
    %v478 = vmul.f32 %v468, %v476
    %v479 = vpack.c.bf16 %v477, %v477
    %v480 = vpack.c.bf16 %v478, %v478
    %v482 = vsel %vm364, %v479, 0
    %vm484 = vcmask 1043456
    %v486 = vsel %vm484, %v362, 0
    %488 = vmatprep.subr.bf16.mxu0 0
    %489 = vmatpush1.bf16.msra.mxu0 %v486
    %490 = vmatprep.subr.bf16.mxu0 0
    %491 = vmatpush1.bf16.msra.mxu0 0
    %492 = vmatprep.subr.bf16.mxu0 0
    %493 = vmatpush1.bf16.msra.mxu0 0
    %494 = vmatprep.subr.bf16.mxu0 0
    %495 = vmatpush1.bf16.msra.mxu0 0
    %496 = vmatprep.subr.bf16.mxu0 0
    %497 = vmatpush1.bf16.msra.mxu0 0
    %498 = vmatprep.subr.bf16.mxu0 0
    %499 = vmatpush1.bf16.msra.mxu0 0
    %500 = vmatprep.subr.bf16.mxu0 0
    %501 = vmatpush1.bf16.msra.mxu0 0
    %502 = vmatprep.subr.bf16.mxu0 0
    %503 = vmatpush1.bf16.msra.mxu0 0
    %504 = vmatprep.subr.bf16.mxu0 0
    %505 = vmatpush1.bf16.msra.mxu0 0
    %506 = vmatprep.subr.bf16.mxu0 0
    %507 = vmatpush1.bf16.msra.mxu0 0
    %508 = vmatprep.subr.bf16.mxu0 0
    %509 = vmatpush1.bf16.msra.mxu0 0
    %510 = vmatprep.subr.bf16.mxu0 0
    %511 = vmatpush1.bf16.msra.mxu0 0
    %512 = vmatprep.subr.bf16.mxu0 0
    %513 = vmatpush1.bf16.msra.mxu0 0
    %514 = vmatprep.subr.bf16.mxu0 0
    %515 = vmatpush1.bf16.msra.mxu0 0
    %516 = vmatprep.subr.bf16.mxu0 0
    %517 = vmatpush1.bf16.msra.mxu0 0
    %518 = vmatprep.subr.bf16.mxu0 0
    %519 = vmatpush1.bf16.msra.mxu0 0
    %520 = vmatprep.mubr.bf16.mxu0 0
    %521 = vmatmul.mubr.bf16.gmra.mrb[0].mxu0 %v482
    %v522 = vpop.f32.mrb[0].mxu0
    %v523 = vadd.f32 0.0, %v522
    %v524 = vpop.f32.mrb[0].mxu0
    %v525 = vpop.f32.mrb[0].mxu0
    %v526 = vpop.f32.mrb[0].mxu0
    %527 = vdwg.mxu0
    %v529 = vsel %vm364, %v480, 0
    %v532 = vsel %vm484, %v363, 0
    %534 = vmatprep.subr.bf16.mxu0 0
    %535 = vmatpush1.bf16.msra.mxu0 %v532
    %536 = vmatprep.subr.bf16.mxu0 0
    %537 = vmatpush1.bf16.msra.mxu0 0
    %538 = vmatprep.subr.bf16.mxu0 0
    %539 = vmatpush1.bf16.msra.mxu0 0
    %540 = vmatprep.subr.bf16.mxu0 0
    %541 = vmatpush1.bf16.msra.mxu0 0
    %542 = vmatprep.subr.bf16.mxu0 0
    %543 = vmatpush1.bf16.msra.mxu0 0
    %544 = vmatprep.subr.bf16.mxu0 0
    %545 = vmatpush1.bf16.msra.mxu0 0
    %546 = vmatprep.subr.bf16.mxu0 0
    %547 = vmatpush1.bf16.msra.mxu0 0
    %548 = vmatprep.subr.bf16.mxu0 0
    %549 = vmatpush1.bf16.msra.mxu0 0
    %550 = vmatprep.subr.bf16.mxu0 0
    %551 = vmatpush1.bf16.msra.mxu0 0
    %552 = vmatprep.subr.bf16.mxu0 0
    %553 = vmatpush1.bf16.msra.mxu0 0
    %554 = vmatprep.subr.bf16.mxu0 0
    %555 = vmatpush1.bf16.msra.mxu0 0
    %556 = vmatprep.subr.bf16.mxu0 0
    %557 = vmatpush1.bf16.msra.mxu0 0
    %558 = vmatprep.subr.bf16.mxu0 0
    %559 = vmatpush1.bf16.msra.mxu0 0
    %560 = vmatprep.subr.bf16.mxu0 0
    %561 = vmatpush1.bf16.msra.mxu0 0
    %562 = vmatprep.subr.bf16.mxu0 0
    %563 = vmatpush1.bf16.msra.mxu0 0
    %564 = vmatprep.subr.bf16.mxu0 0
    %565 = vmatpush1.bf16.msra.mxu0 0
    %566 = vmatprep.mubr.bf16.mxu0 0
    %567 = vmatmul.mubr.bf16.gmra.mrb[0].mxu0 %v529
    %v568 = vpop.f32.mrb[0].mxu0
    %v569 = vadd.f32 0.0, %v568
    %v570 = vpop.f32.mrb[0].mxu0
    %v571 = vpop.f32.mrb[0].mxu0
    %v572 = vpop.f32.mrb[0].mxu0
    %573 = vdwg.mxu0
    %575 = vrot.lane.b32.xlu0 %v358, 120
    %v576 = vpop.permute.xlu0 %575
    %578 = vrot.lane.b32.xlu0 %v360, 120
    %v579 = vpop.permute.xlu0 %578
    %v581 = vsel %vm364, %v576, 0
    %v584 = vsel %vm364, %v579, 0
    %586 = vmatprep.subr.bf16.mxu0 0
    %587 = vmatpush1.bf16.xpose.msra.mxu0 %v584
    %588 = vmatprep.subr.bf16.mxu0 0
    %589 = vmatpush1.bf16.xpose.msra.mxu0 0
    %590 = vmatprep.subr.bf16.mxu0 0
    %591 = vmatpush1.bf16.xpose.msra.mxu0 0
    %592 = vmatprep.subr.bf16.mxu0 0
    %593 = vmatpush1.bf16.xpose.msra.mxu0 0
    %594 = vmatprep.subr.bf16.mxu0 0
    %595 = vmatpush1.bf16.xpose.msra.mxu0 0
    %596 = vmatprep.subr.bf16.mxu0 0
    %597 = vmatpush1.bf16.xpose.msra.mxu0 0
    %598 = vmatprep.subr.bf16.mxu0 0
    %599 = vmatpush1.bf16.xpose.msra.mxu0 0
    %600 = vmatprep.subr.bf16.mxu0 0
    %601 = vmatpush1.bf16.xpose.msra.mxu0 0
    %602 = vmatprep.subr.bf16.mxu0 0
    %603 = vmatpush1.bf16.xpose.msra.mxu0 0
    %604 = vmatprep.subr.bf16.mxu0 0
    %605 = vmatpush1.bf16.xpose.msra.mxu0 0
    %606 = vmatprep.subr.bf16.mxu0 0
    %607 = vmatpush1.bf16.xpose.msra.mxu0 0
    %608 = vmatprep.subr.bf16.mxu0 0
    %609 = vmatpush1.bf16.xpose.msra.mxu0 0
    %610 = vmatprep.subr.bf16.mxu0 0
    %611 = vmatpush1.bf16.xpose.msra.mxu0 0
    %612 = vmatprep.subr.bf16.mxu0 0
    %613 = vmatpush1.bf16.xpose.msra.mxu0 0
    %614 = vmatprep.subr.bf16.mxu0 0
    %615 = vmatpush1.bf16.xpose.msra.mxu0 0
    %616 = vmatprep.subr.bf16.mxu0 0
    %617 = vmatpush1.bf16.xpose.msra.mxu0 0
    %618 = vmatprep.mubr.bf16.mxu0 0
    %619 = vmatmul.mubr.bf16.gmra.mrb[0].mxu0 %v581
    %v620 = vpop.f32.mrb[0].mxu0
    %v621 = vadd.f32 0.0, %v620
    %v622 = vpop.f32.mrb[0].mxu0
    %v623 = vpop.f32.mrb[0].mxu0
    %v624 = vpop.f32.mrb[0].mxu0
    %625 = vdwg.mxu0
    %627 = vrot.lane.b32.xlu0 %v359, 120
    %v628 = vpop.permute.xlu0 %627
    %630 = vrot.lane.b32.xlu0 %v361, 120
    %v631 = vpop.permute.xlu0 %630
    %v633 = vsel %vm364, %v628, 0
    %v636 = vsel %vm364, %v631, 0
    %638 = vmatprep.subr.bf16.mxu0 0
    %639 = vmatpush1.bf16.xpose.msra.mxu0 %v636
    %640 = vmatprep.subr.bf16.mxu0 0
    %641 = vmatpush1.bf16.xpose.msra.mxu0 0
    %642 = vmatprep.subr.bf16.mxu0 0
    %643 = vmatpush1.bf16.xpose.msra.mxu0 0
    %644 = vmatprep.subr.bf16.mxu0 0
    %645 = vmatpush1.bf16.xpose.msra.mxu0 0
    %646 = vmatprep.subr.bf16.mxu0 0
    %647 = vmatpush1.bf16.xpose.msra.mxu0 0
    %648 = vmatprep.subr.bf16.mxu0 0
    %649 = vmatpush1.bf16.xpose.msra.mxu0 0
    %650 = vmatprep.subr.bf16.mxu0 0
    %651 = vmatpush1.bf16.xpose.msra.mxu0 0
    %652 = vmatprep.subr.bf16.mxu0 0
    %653 = vmatpush1.bf16.xpose.msra.mxu0 0
    %654 = vmatprep.subr.bf16.mxu0 0
    %655 = vmatpush1.bf16.xpose.msra.mxu0 0
    %656 = vmatprep.subr.bf16.mxu0 0
    %657 = vmatpush1.bf16.xpose.msra.mxu0 0
    %658 = vmatprep.subr.bf16.mxu0 0
    %659 = vmatpush1.bf16.xpose.msra.mxu0 0
    %660 = vmatprep.subr.bf16.mxu0 0
    %661 = vmatpush1.bf16.xpose.msra.mxu0 0
    %662 = vmatprep.subr.bf16.mxu0 0
    %663 = vmatpush1.bf16.xpose.msra.mxu0 0
    %664 = vmatprep.subr.bf16.mxu0 0
    %665 = vmatpush1.bf16.xpose.msra.mxu0 0
    %666 = vmatprep.subr.bf16.mxu0 0
    %667 = vmatpush1.bf16.xpose.msra.mxu0 0
    %668 = vmatprep.subr.bf16.mxu0 0
    %669 = vmatpush1.bf16.xpose.msra.mxu0 0
    %670 = vmatprep.mubr.bf16.mxu0 0
    %671 = vmatmul.mubr.bf16.gmra.mrb[0].mxu0 %v633
    %v672 = vpop.f32.mrb[0].mxu0
    %v673 = vadd.f32 0.0, %v672
    %v674 = vpop.f32.mrb[0].mxu0
    %v675 = vpop.f32.mrb[0].mxu0
    %v676 = vpop.f32.mrb[0].mxu0
    %677 = vdwg.mxu0
    %v678 = vsel %vm364, %v621, -inf
    %679 = vmax.xlane.f32.xlu0 %v678
    %v680 = vpop.xlane.xlu0 %679
    %v681 = vsel %vm364, %v673, -inf
    %682 = vmax.xlane.f32.xlu0 %v681
    %v683 = vpop.xlane.xlu0 %682
    %v684 = vsub.f32 %v621, %v680
    %v685 = vsub.f32 %v673, %v683
    %v686 = vmul.f32 %v684, 1.442695
    %v687 = vpow.pop %v686
    %v688 = vmul.f32 %v685, 1.442695
    %v689 = vpow.pop %v688
    %v690 = vsel %vm364, %v687, 0.0
    %691 = vadd.xlane.f32.xlu0 %v690
    %v692 = vpop.xlane.xlu0 %691
    %v693 = vsel %vm364, %v689, 0.0
    %694 = vadd.xlane.f32.xlu0 %v693
    %v695 = vpop.xlane.xlu0 %694
    %v696 = vrcp.pop %v692
    %v697 = vrcp.pop %v695
    %v698 = vmul.f32 %v687, %v696
    %v699 = vmul.f32 %v689, %v697
    %v700 = vpack.c.bf16 %v698, %v698
    %v701 = vpack.c.bf16 %v699, %v699
    %703 = vrot.lane.b32.xlu0 %v362, 120
    %v704 = vpop.permute.xlu0 %703
    %v706 = vsel %vm364, %v700, 0
    %v709 = vsel %vm484, %v704, 0
    %711 = vmatprep.subr.bf16.mxu0 0
    %712 = vmatpush1.bf16.msra.mxu0 %v709
    %713 = vmatprep.subr.bf16.mxu0 0
    %714 = vmatpush1.bf16.msra.mxu0 0
    %715 = vmatprep.subr.bf16.mxu0 0
    %716 = vmatpush1.bf16.msra.mxu0 0
    %717 = vmatprep.subr.bf16.mxu0 0
    %718 = vmatpush1.bf16.msra.mxu0 0
    %719 = vmatprep.subr.bf16.mxu0 0
    %720 = vmatpush1.bf16.msra.mxu0 0
    %721 = vmatprep.subr.bf16.mxu0 0
    %722 = vmatpush1.bf16.msra.mxu0 0
    %723 = vmatprep.subr.bf16.mxu0 0
    %724 = vmatpush1.bf16.msra.mxu0 0
    %725 = vmatprep.subr.bf16.mxu0 0
    %726 = vmatpush1.bf16.msra.mxu0 0
    %727 = vmatprep.subr.bf16.mxu0 0
    %728 = vmatpush1.bf16.msra.mxu0 0
    %729 = vmatprep.subr.bf16.mxu0 0
    %730 = vmatpush1.bf16.msra.mxu0 0
    %731 = vmatprep.subr.bf16.mxu0 0
    %732 = vmatpush1.bf16.msra.mxu0 0
    %733 = vmatprep.subr.bf16.mxu0 0
    %734 = vmatpush1.bf16.msra.mxu0 0
    %735 = vmatprep.subr.bf16.mxu0 0
    %736 = vmatpush1.bf16.msra.mxu0 0
    %737 = vmatprep.subr.bf16.mxu0 0
    %738 = vmatpush1.bf16.msra.mxu0 0
    %739 = vmatprep.subr.bf16.mxu0 0
    %740 = vmatpush1.bf16.msra.mxu0 0
    %741 = vmatprep.subr.bf16.mxu0 0
    %742 = vmatpush1.bf16.msra.mxu0 0
    %743 = vmatprep.mubr.bf16.mxu0 0
    %744 = vmatmul.mubr.bf16.gmra.mrb[0].mxu0 %v706
    %v745 = vpop.f32.mrb[0].mxu0
    %v746 = vadd.f32 0.0, %v745
    %v747 = vpop.f32.mrb[0].mxu0
    %v748 = vpop.f32.mrb[0].mxu0
    %v749 = vpop.f32.mrb[0].mxu0
    %750 = vdwg.mxu0
    %752 = vrot.lane.b32.xlu0 %v363, 120
    %v753 = vpop.permute.xlu0 %752
    %v755 = vsel %vm364, %v701, 0
    %v758 = vsel %vm484, %v753, 0
    %760 = vmatprep.subr.bf16.mxu0 0
    %761 = vmatpush1.bf16.msra.mxu0 %v758
    %762 = vmatprep.subr.bf16.mxu0 0
    %763 = vmatpush1.bf16.msra.mxu0 0
    %764 = vmatprep.subr.bf16.mxu0 0
    %765 = vmatpush1.bf16.msra.mxu0 0
    %766 = vmatprep.subr.bf16.mxu0 0
    %767 = vmatpush1.bf16.msra.mxu0 0
    %768 = vmatprep.subr.bf16.mxu0 0
    %769 = vmatpush1.bf16.msra.mxu0 0
    %770 = vmatprep.subr.bf16.mxu0 0
    %771 = vmatpush1.bf16.msra.mxu0 0
    %772 = vmatprep.subr.bf16.mxu0 0
    %773 = vmatpush1.bf16.msra.mxu0 0
    %774 = vmatprep.subr.bf16.mxu0 0
    %775 = vmatpush1.bf16.msra.mxu0 0
    %776 = vmatprep.subr.bf16.mxu0 0
    %777 = vmatpush1.bf16.msra.mxu0 0
    %778 = vmatprep.subr.bf16.mxu0 0
    %779 = vmatpush1.bf16.msra.mxu0 0
    %780 = vmatprep.subr.bf16.mxu0 0
    %781 = vmatpush1.bf16.msra.mxu0 0
    %782 = vmatprep.subr.bf16.mxu0 0
    %783 = vmatpush1.bf16.msra.mxu0 0
    %784 = vmatprep.subr.bf16.mxu0 0
    %785 = vmatpush1.bf16.msra.mxu0 0
    %786 = vmatprep.subr.bf16.mxu0 0
    %787 = vmatpush1.bf16.msra.mxu0 0
    %788 = vmatprep.subr.bf16.mxu0 0
    %789 = vmatpush1.bf16.msra.mxu0 0
    %790 = vmatprep.subr.bf16.mxu0 0
    %791 = vmatpush1.bf16.msra.mxu0 0
    %792 = vmatprep.mubr.bf16.mxu0 0
    %793 = vmatmul.mubr.bf16.gmra.mrb[0].mxu0 %v755
    %v794 = vpop.f32.mrb[0].mxu0
    %v795 = vadd.f32 0.0, %v794
    %v796 = vpop.f32.mrb[0].mxu0
    %v797 = vpop.f32.mrb[0].mxu0
    %v798 = vpop.f32.mrb[0].mxu0
    %799 = vdwg.mxu0
    %800 = vrot.lane.b32.xlu0 %v358, 112
    %v801 = vpop.permute.xlu0 %800
    %802 = vrot.lane.b32.xlu0 %v360, 112
    %v803 = vpop.permute.xlu0 %802
    %v805 = vsel %vm364, %v801, 0
    %v808 = vsel %vm364, %v803, 0
    %810 = vmatprep.subr.bf16.mxu0 0
    %811 = vmatpush1.bf16.xpose.msra.mxu0 %v808
    %812 = vmatprep.subr.bf16.mxu0 0
    %813 = vmatpush1.bf16.xpose.msra.mxu0 0
    %814 = vmatprep.subr.bf16.mxu0 0
    %815 = vmatpush1.bf16.xpose.msra.mxu0 0
    %816 = vmatprep.subr.bf16.mxu0 0
    %817 = vmatpush1.bf16.xpose.msra.mxu0 0
    %818 = vmatprep.subr.bf16.mxu0 0
    %819 = vmatpush1.bf16.xpose.msra.mxu0 0
    %820 = vmatprep.subr.bf16.mxu0 0
    %821 = vmatpush1.bf16.xpose.msra.mxu0 0
    %822 = vmatprep.subr.bf16.mxu0 0
    %823 = vmatpush1.bf16.xpose.msra.mxu0 0
    %824 = vmatprep.subr.bf16.mxu0 0
    %825 = vmatpush1.bf16.xpose.msra.mxu0 0
    %826 = vmatprep.subr.bf16.mxu0 0
    %827 = vmatpush1.bf16.xpose.msra.mxu0 0
    %828 = vmatprep.subr.bf16.mxu0 0
    %829 = vmatpush1.bf16.xpose.msra.mxu0 0
    %830 = vmatprep.subr.bf16.mxu0 0
    %831 = vmatpush1.bf16.xpose.msra.mxu0 0
    %832 = vmatprep.subr.bf16.mxu0 0
    %833 = vmatpush1.bf16.xpose.msra.mxu0 0
    %834 = vmatprep.subr.bf16.mxu0 0
    %835 = vmatpush1.bf16.xpose.msra.mxu0 0
    %836 = vmatprep.subr.bf16.mxu0 0
    %837 = vmatpush1.bf16.xpose.msra.mxu0 0
    %838 = vmatprep.subr.bf16.mxu0 0
    %839 = vmatpush1.bf16.xpose.msra.mxu0 0
    %840 = vmatprep.subr.bf16.mxu0 0
    %841 = vmatpush1.bf16.xpose.msra.mxu0 0
    %842 = vmatprep.mubr.bf16.mxu0 0
    %843 = vmatmul.mubr.bf16.gmra.mrb[0].mxu0 %v805
    %v844 = vpop.f32.mrb[0].mxu0
    %v845 = vadd.f32 0.0, %v844
    %v846 = vpop.f32.mrb[0].mxu0
    %v847 = vpop.f32.mrb[0].mxu0
    %v848 = vpop.f32.mrb[0].mxu0
    %849 = vdwg.mxu0
    %850 = vrot.lane.b32.xlu0 %v359, 112
    %v851 = vpop.permute.xlu0 %850
    %852 = vrot.lane.b32.xlu0 %v361, 112
    %v853 = vpop.permute.xlu0 %852
    %v855 = vsel %vm364, %v851, 0
    %v858 = vsel %vm364, %v853, 0
    %860 = vmatprep.subr.bf16.mxu0 0
    %861 = vmatpush1.bf16.xpose.msra.mxu0 %v858
    %862 = vmatprep.subr.bf16.mxu0 0
    %863 = vmatpush1.bf16.xpose.msra.mxu0 0
    %864 = vmatprep.subr.bf16.mxu0 0
    %865 = vmatpush1.bf16.xpose.msra.mxu0 0
    %866 = vmatprep.subr.bf16.mxu0 0
    %867 = vmatpush1.bf16.xpose.msra.mxu0 0
    %868 = vmatprep.subr.bf16.mxu0 0
    %869 = vmatpush1.bf16.xpose.msra.mxu0 0
    %870 = vmatprep.subr.bf16.mxu0 0
    %871 = vmatpush1.bf16.xpose.msra.mxu0 0
    %872 = vmatprep.subr.bf16.mxu0 0
    %873 = vmatpush1.bf16.xpose.msra.mxu0 0
    %874 = vmatprep.subr.bf16.mxu0 0
    %875 = vmatpush1.bf16.xpose.msra.mxu0 0
    %876 = vmatprep.subr.bf16.mxu0 0
    %877 = vmatpush1.bf16.xpose.msra.mxu0 0
    %878 = vmatprep.subr.bf16.mxu0 0
    %879 = vmatpush1.bf16.xpose.msra.mxu0 0
    %880 = vmatprep.subr.bf16.mxu0 0
    %881 = vmatpush1.bf16.xpose.msra.mxu0 0
    %882 = vmatprep.subr.bf16.mxu0 0
    %883 = vmatpush1.bf16.xpose.msra.mxu0 0
    %884 = vmatprep.subr.bf16.mxu0 0
    %885 = vmatpush1.bf16.xpose.msra.mxu0 0
    %886 = vmatprep.subr.bf16.mxu0 0
    %887 = vmatpush1.bf16.xpose.msra.mxu0 0
    %888 = vmatprep.subr.bf16.mxu0 0
    %889 = vmatpush1.bf16.xpose.msra.mxu0 0
    %890 = vmatprep.subr.bf16.mxu0 0
    %891 = vmatpush1.bf16.xpose.msra.mxu0 0
    %892 = vmatprep.mubr.bf16.mxu0 0
    %893 = vmatmul.mubr.bf16.gmra.mrb[0].mxu0 %v855
    %v894 = vpop.f32.mrb[0].mxu0
    %v895 = vadd.f32 0.0, %v894
    %v896 = vpop.f32.mrb[0].mxu0
    %v897 = vpop.f32.mrb[0].mxu0
    %v898 = vpop.f32.mrb[0].mxu0
    %899 = vdwg.mxu0
    %v900 = vsel %vm364, %v845, -inf
    %901 = vmax.xlane.f32.xlu0 %v900
    %v902 = vpop.xlane.xlu0 %901
    %v903 = vsel %vm364, %v895, -inf
    %904 = vmax.xlane.f32.xlu0 %v903
    %v905 = vpop.xlane.xlu0 %904
    %v906 = vsub.f32 %v845, %v902
    %v907 = vsub.f32 %v895, %v905
    %v908 = vmul.f32 %v906, 1.442695
    %v909 = vpow.pop %v908
    %v910 = vmul.f32 %v907, 1.442695
    %v911 = vpow.pop %v910
    %v912 = vsel %vm364, %v909, 0.0
    %913 = vadd.xlane.f32.xlu0 %v912
    %v914 = vpop.xlane.xlu0 %913
    %v915 = vsel %vm364, %v911, 0.0
    %916 = vadd.xlane.f32.xlu0 %v915
    %v917 = vpop.xlane.xlu0 %916
    %v918 = vrcp.pop %v914
    %v919 = vrcp.pop %v917
    %v920 = vmul.f32 %v909, %v918
    %v921 = vmul.f32 %v911, %v919
    %v922 = vpack.c.bf16 %v920, %v920
    %v923 = vpack.c.bf16 %v921, %v921
    %924 = vrot.lane.b32.xlu0 %v362, 112
    %v925 = vpop.permute.xlu0 %924
    %v927 = vsel %vm364, %v922, 0
    %v930 = vsel %vm484, %v925, 0
    %932 = vmatprep.subr.bf16.mxu0 0
    %933 = vmatpush1.bf16.msra.mxu0 %v930
    %934 = vmatprep.subr.bf16.mxu0 0
    %935 = vmatpush1.bf16.msra.mxu0 0
    %936 = vmatprep.subr.bf16.mxu0 0
    %937 = vmatpush1.bf16.msra.mxu0 0
    %938 = vmatprep.subr.bf16.mxu0 0
    %939 = vmatpush1.bf16.msra.mxu0 0
    %940 = vmatprep.subr.bf16.mxu0 0
    %941 = vmatpush1.bf16.msra.mxu0 0
    %942 = vmatprep.subr.bf16.mxu0 0
    %943 = vmatpush1.bf16.msra.mxu0 0
    %944 = vmatprep.subr.bf16.mxu0 0
    %945 = vmatpush1.bf16.msra.mxu0 0
    %946 = vmatprep.subr.bf16.mxu0 0
    %947 = vmatpush1.bf16.msra.mxu0 0
    %948 = vmatprep.subr.bf16.mxu0 0
    %949 = vmatpush1.bf16.msra.mxu0 0
    %950 = vmatprep.subr.bf16.mxu0 0
    %951 = vmatpush1.bf16.msra.mxu0 0
    %952 = vmatprep.subr.bf16.mxu0 0
    %953 = vmatpush1.bf16.msra.mxu0 0
    %954 = vmatprep.subr.bf16.mxu0 0
    %955 = vmatpush1.bf16.msra.mxu0 0
    %956 = vmatprep.subr.bf16.mxu0 0
    %957 = vmatpush1.bf16.msra.mxu0 0
    %958 = vmatprep.subr.bf16.mxu0 0
    %959 = vmatpush1.bf16.msra.mxu0 0
    %960 = vmatprep.subr.bf16.mxu0 0
    %961 = vmatpush1.bf16.msra.mxu0 0
    %962 = vmatprep.subr.bf16.mxu0 0
    %963 = vmatpush1.bf16.msra.mxu0 0
    %964 = vmatprep.mubr.bf16.mxu0 0
    %965 = vmatmul.mubr.bf16.gmra.mrb[0].mxu0 %v927
    %v966 = vpop.f32.mrb[0].mxu0
    %v967 = vadd.f32 0.0, %v966
    %v968 = vpop.f32.mrb[0].mxu0
    %v969 = vpop.f32.mrb[0].mxu0
    %v970 = vpop.f32.mrb[0].mxu0
    %971 = vdwg.mxu0
    %972 = vrot.lane.b32.xlu0 %v363, 112
    %v973 = vpop.permute.xlu0 %972
    %v975 = vsel %vm364, %v923, 0
    %v978 = vsel %vm484, %v973, 0
    %980 = vmatprep.subr.bf16.mxu0 0
    %981 = vmatpush1.bf16.msra.mxu0 %v978
    %982 = vmatprep.subr.bf16.mxu0 0
    %983 = vmatpush1.bf16.msra.mxu0 0
    %984 = vmatprep.subr.bf16.mxu0 0
    %985 = vmatpush1.bf16.msra.mxu0 0
    %986 = vmatprep.subr.bf16.mxu0 0
    %987 = vmatpush1.bf16.msra.mxu0 0
    %988 = vmatprep.subr.bf16.mxu0 0
    %989 = vmatpush1.bf16.msra.mxu0 0
    %990 = vmatprep.subr.bf16.mxu0 0
    %991 = vmatpush1.bf16.msra.mxu0 0
    %992 = vmatprep.subr.bf16.mxu0 0
    %993 = vmatpush1.bf16.msra.mxu0 0
    %994 = vmatprep.subr.bf16.mxu0 0
    %995 = vmatpush1.bf16.msra.mxu0 0
    %996 = vmatprep.subr.bf16.mxu0 0
    %997 = vmatpush1.bf16.msra.mxu0 0
    %998 = vmatprep.subr.bf16.mxu0 0
    %999 = vmatpush1.bf16.msra.mxu0 0
    %1000 = vmatprep.subr.bf16.mxu0 0
    %1001 = vmatpush1.bf16.msra.mxu0 0
    %1002 = vmatprep.subr.bf16.mxu0 0
    %1003 = vmatpush1.bf16.msra.mxu0 0
    %1004 = vmatprep.subr.bf16.mxu0 0
    %1005 = vmatpush1.bf16.msra.mxu0 0
    %1006 = vmatprep.subr.bf16.mxu0 0
    %1007 = vmatpush1.bf16.msra.mxu0 0
    %1008 = vmatprep.subr.bf16.mxu0 0
    %1009 = vmatpush1.bf16.msra.mxu0 0
    %1010 = vmatprep.subr.bf16.mxu0 0
    %1011 = vmatpush1.bf16.msra.mxu0 0
    %1012 = vmatprep.mubr.bf16.mxu0 0
    %1013 = vmatmul.mubr.bf16.gmra.mrb[0].mxu0 %v975
    %v1014 = vpop.f32.mrb[0].mxu0
    %v1015 = vadd.f32 0.0, %v1014
    %v1016 = vpop.f32.mrb[0].mxu0
    %v1017 = vpop.f32.mrb[0].mxu0
    %v1018 = vpop.f32.mrb[0].mxu0
    %1019 = vdwg.mxu0
    %1020 = vrot.lane.b32.xlu0 %v358, 104
    %v1021 = vpop.permute.xlu0 %1020
    %1022 = vrot.lane.b32.xlu0 %v360, 104
    %v1023 = vpop.permute.xlu0 %1022
    %v1025 = vsel %vm364, %v1021, 0
    %v1028 = vsel %vm364, %v1023, 0
    %1030 = vmatprep.subr.bf16.mxu0 0
    %1031 = vmatpush1.bf16.xpose.msra.mxu0 %v1028
    %1032 = vmatprep.subr.bf16.mxu0 0
    %1033 = vmatpush1.bf16.xpose.msra.mxu0 0
    %1034 = vmatprep.subr.bf16.mxu0 0
    %1035 = vmatpush1.bf16.xpose.msra.mxu0 0
    %1036 = vmatprep.subr.bf16.mxu0 0
    %1037 = vmatpush1.bf16.xpose.msra.mxu0 0
    %1038 = vmatprep.subr.bf16.mxu0 0
    %1039 = vmatpush1.bf16.xpose.msra.mxu0 0
    %1040 = vmatprep.subr.bf16.mxu0 0
    %1041 = vmatpush1.bf16.xpose.msra.mxu0 0
    %1042 = vmatprep.subr.bf16.mxu0 0
    %1043 = vmatpush1.bf16.xpose.msra.mxu0 0
    %1044 = vmatprep.subr.bf16.mxu0 0
    %1045 = vmatpush1.bf16.xpose.msra.mxu0 0
    %1046 = vmatprep.subr.bf16.mxu0 0
    %1047 = vmatpush1.bf16.xpose.msra.mxu0 0
    %1048 = vmatprep.subr.bf16.mxu0 0
    %1049 = vmatpush1.bf16.xpose.msra.mxu0 0
    %1050 = vmatprep.subr.bf16.mxu0 0
    %1051 = vmatpush1.bf16.xpose.msra.mxu0 0
    %1052 = vmatprep.subr.bf16.mxu0 0
    %1053 = vmatpush1.bf16.xpose.msra.mxu0 0
    %1054 = vmatprep.subr.bf16.mxu0 0
    %1055 = vmatpush1.bf16.xpose.msra.mxu0 0
    %1056 = vmatprep.subr.bf16.mxu0 0
    %1057 = vmatpush1.bf16.xpose.msra.mxu0 0
    %1058 = vmatprep.subr.bf16.mxu0 0
    %1059 = vmatpush1.bf16.xpose.msra.mxu0 0
    %1060 = vmatprep.subr.bf16.mxu0 0
    %1061 = vmatpush1.bf16.xpose.msra.mxu0 0
    %1062 = vmatprep.mubr.bf16.mxu0 0
    %1063 = vmatmul.mubr.bf16.gmra.mrb[0].mxu0 %v1025
    %v1064 = vpop.f32.mrb[0].mxu0
    %v1065 = vadd.f32 0.0, %v1064
    %v1066 = vpop.f32.mrb[0].mxu0
    %v1067 = vpop.f32.mrb[0].mxu0
    %v1068 = vpop.f32.mrb[0].mxu0
    %1069 = vdwg.mxu0
    %1070 = vrot.lane.b32.xlu0 %v359, 104
    %v1071 = vpop.permute.xlu0 %1070
    %1072 = vrot.lane.b32.xlu0 %v361, 104
    %v1073 = vpop.permute.xlu0 %1072
    %v1075 = vsel %vm364, %v1071, 0
    %v1078 = vsel %vm364, %v1073, 0
    %1080 = vmatprep.subr.bf16.mxu0 0
    %1081 = vmatpush1.bf16.xpose.msra.mxu0 %v1078
    %1082 = vmatprep.subr.bf16.mxu0 0
    %1083 = vmatpush1.bf16.xpose.msra.mxu0 0
    %1084 = vmatprep.subr.bf16.mxu0 0
    %1085 = vmatpush1.bf16.xpose.msra.mxu0 0
    %1086 = vmatprep.subr.bf16.mxu0 0
    %1087 = vmatpush1.bf16.xpose.msra.mxu0 0
    %1088 = vmatprep.subr.bf16.mxu0 0
    %1089 = vmatpush1.bf16.xpose.msra.mxu0 0
    %1090 = vmatprep.subr.bf16.mxu0 0
    %1091 = vmatpush1.bf16.xpose.msra.mxu0 0
    %1092 = vmatprep.subr.bf16.mxu0 0
    %1093 = vmatpush1.bf16.xpose.msra.mxu0 0
    %1094 = vmatprep.subr.bf16.mxu0 0
    %1095 = vmatpush1.bf16.xpose.msra.mxu0 0
    %1096 = vmatprep.subr.bf16.mxu0 0
    %1097 = vmatpush1.bf16.xpose.msra.mxu0 0
    %1098 = vmatprep.subr.bf16.mxu0 0
    %1099 = vmatpush1.bf16.xpose.msra.mxu0 0
    %1100 = vmatprep.subr.bf16.mxu0 0
    %1101 = vmatpush1.bf16.xpose.msra.mxu0 0
    %1102 = vmatprep.subr.bf16.mxu0 0
    %1103 = vmatpush1.bf16.xpose.msra.mxu0 0
    %1104 = vmatprep.subr.bf16.mxu0 0
    %1105 = vmatpush1.bf16.xpose.msra.mxu0 0
    %1106 = vmatprep.subr.bf16.mxu0 0
    %1107 = vmatpush1.bf16.xpose.msra.mxu0 0
    %1108 = vmatprep.subr.bf16.mxu0 0
    %1109 = vmatpush1.bf16.xpose.msra.mxu0 0
    %1110 = vmatprep.subr.bf16.mxu0 0
    %1111 = vmatpush1.bf16.xpose.msra.mxu0 0
    %1112 = vmatprep.mubr.bf16.mxu0 0
    %1113 = vmatmul.mubr.bf16.gmra.mrb[0].mxu0 %v1075
    %v1114 = vpop.f32.mrb[0].mxu0
    %v1115 = vadd.f32 0.0, %v1114
    %v1116 = vpop.f32.mrb[0].mxu0
    %v1117 = vpop.f32.mrb[0].mxu0
    %v1118 = vpop.f32.mrb[0].mxu0
    %1119 = vdwg.mxu0
    %v1120 = vsel %vm364, %v1065, -inf
    %1121 = vmax.xlane.f32.xlu0 %v1120
    %v1122 = vpop.xlane.xlu0 %1121
    %v1123 = vsel %vm364, %v1115, -inf
    %1124 = vmax.xlane.f32.xlu0 %v1123
    %v1125 = vpop.xlane.xlu0 %1124
    %v1126 = vsub.f32 %v1065, %v1122
    %v1127 = vsub.f32 %v1115, %v1125
    %v1128 = vmul.f32 %v1126, 1.442695
    %v1129 = vpow.pop %v1128
    %v1130 = vmul.f32 %v1127, 1.442695
    %v1131 = vpow.pop %v1130
    %v1132 = vsel %vm364, %v1129, 0.0
    %1133 = vadd.xlane.f32.xlu0 %v1132
    %v1134 = vpop.xlane.xlu0 %1133
    %v1135 = vsel %vm364, %v1131, 0.0
    %1136 = vadd.xlane.f32.xlu0 %v1135
    %v1137 = vpop.xlane.xlu0 %1136
    %v1138 = vrcp.pop %v1134
    %v1139 = vrcp.pop %v1137
    %v1140 = vmul.f32 %v1129, %v1138
    %v1141 = vmul.f32 %v1131, %v1139
    %v1142 = vpack.c.bf16 %v1140, %v1140
    %v1143 = vpack.c.bf16 %v1141, %v1141
    %1144 = vrot.lane.b32.xlu0 %v362, 104
    %v1145 = vpop.permute.xlu0 %1144
    %v1147 = vsel %vm364, %v1142, 0
    %v1150 = vsel %vm484, %v1145, 0
    %1152 = vmatprep.subr.bf16.mxu0 0
    %1153 = vmatpush1.bf16.msra.mxu0 %v1150
    %1154 = vmatprep.subr.bf16.mxu0 0
    %1155 = vmatpush1.bf16.msra.mxu0 0
    %1156 = vmatprep.subr.bf16.mxu0 0
    %1157 = vmatpush1.bf16.msra.mxu0 0
    %1158 = vmatprep.subr.bf16.mxu0 0
    %1159 = vmatpush1.bf16.msra.mxu0 0
    %1160 = vmatprep.subr.bf16.mxu0 0
    %1161 = vmatpush1.bf16.msra.mxu0 0
    %1162 = vmatprep.subr.bf16.mxu0 0
    %1163 = vmatpush1.bf16.msra.mxu0 0
    %1164 = vmatprep.subr.bf16.mxu0 0
    %1165 = vmatpush1.bf16.msra.mxu0 0
    %1166 = vmatprep.subr.bf16.mxu0 0
    %1167 = vmatpush1.bf16.msra.mxu0 0
    %1168 = vmatprep.subr.bf16.mxu0 0
    %1169 = vmatpush1.bf16.msra.mxu0 0
    %1170 = vmatprep.subr.bf16.mxu0 0
    %1171 = vmatpush1.bf16.msra.mxu0 0
    %1172 = vmatprep.subr.bf16.mxu0 0
    %1173 = vmatpush1.bf16.msra.mxu0 0
    %1174 = vmatprep.subr.bf16.mxu0 0
    %1175 = vmatpush1.bf16.msra.mxu0 0
    %1176 = vmatprep.subr.bf16.mxu0 0
    %1177 = vmatpush1.bf16.msra.mxu0 0
    %1178 = vmatprep.subr.bf16.mxu0 0
    %1179 = vmatpush1.bf16.msra.mxu0 0
    %1180 = vmatprep.subr.bf16.mxu0 0
    %1181 = vmatpush1.bf16.msra.mxu0 0
    %1182 = vmatprep.subr.bf16.mxu0 0
    %1183 = vmatpush1.bf16.msra.mxu0 0
    %1184 = vmatprep.mubr.bf16.mxu0 0
    %1185 = vmatmul.mubr.bf16.gmra.mrb[0].mxu0 %v1147
    %v1186 = vpop.f32.mrb[0].mxu0
    %v1187 = vadd.f32 0.0, %v1186
    %v1188 = vpop.f32.mrb[0].mxu0
    %v1189 = vpop.f32.mrb[0].mxu0
    %v1190 = vpop.f32.mrb[0].mxu0
    %1191 = vdwg.mxu0
    %1192 = vrot.lane.b32.xlu0 %v363, 104
    %v1193 = vpop.permute.xlu0 %1192
    %v1195 = vsel %vm364, %v1143, 0
    %v1198 = vsel %vm484, %v1193, 0
    %1200 = vmatprep.subr.bf16.mxu0 0
    %1201 = vmatpush1.bf16.msra.mxu0 %v1198
    %1202 = vmatprep.subr.bf16.mxu0 0
    %1203 = vmatpush1.bf16.msra.mxu0 0
    %1204 = vmatprep.subr.bf16.mxu0 0
    %1205 = vmatpush1.bf16.msra.mxu0 0
    %1206 = vmatprep.subr.bf16.mxu0 0
    %1207 = vmatpush1.bf16.msra.mxu0 0
    %1208 = vmatprep.subr.bf16.mxu0 0
    %1209 = vmatpush1.bf16.msra.mxu0 0
    %1210 = vmatprep.subr.bf16.mxu0 0
    %1211 = vmatpush1.bf16.msra.mxu0 0
    %1212 = vmatprep.subr.bf16.mxu0 0
    %1213 = vmatpush1.bf16.msra.mxu0 0
    %1214 = vmatprep.subr.bf16.mxu0 0
    %1215 = vmatpush1.bf16.msra.mxu0 0
    %1216 = vmatprep.subr.bf16.mxu0 0
    %1217 = vmatpush1.bf16.msra.mxu0 0
    %1218 = vmatprep.subr.bf16.mxu0 0
    %1219 = vmatpush1.bf16.msra.mxu0 0
    %1220 = vmatprep.subr.bf16.mxu0 0
    %1221 = vmatpush1.bf16.msra.mxu0 0
    %1222 = vmatprep.subr.bf16.mxu0 0
    %1223 = vmatpush1.bf16.msra.mxu0 0
    %1224 = vmatprep.subr.bf16.mxu0 0
    %1225 = vmatpush1.bf16.msra.mxu0 0
    %1226 = vmatprep.subr.bf16.mxu0 0
    %1227 = vmatpush1.bf16.msra.mxu0 0
    %1228 = vmatprep.subr.bf16.mxu0 0
    %1229 = vmatpush1.bf16.msra.mxu0 0
    %1230 = vmatprep.subr.bf16.mxu0 0
    %1231 = vmatpush1.bf16.msra.mxu0 0
    %1232 = vmatprep.mubr.bf16.mxu0 0
    %1233 = vmatmul.mubr.bf16.gmra.mrb[0].mxu0 %v1195
    %v1234 = vpop.f32.mrb[0].mxu0
    %v1235 = vadd.f32 0.0, %v1234
    %v1236 = vpop.f32.mrb[0].mxu0
    %v1237 = vpop.f32.mrb[0].mxu0
    %v1238 = vpop.f32.mrb[0].mxu0
    %1239 = vdwg.mxu0
    %1240 = vst.msk [vmem:[#allocation11] sm:$0xff] %vm364, %v477
    %1241 = vst.msk [vmem:[#allocation11 + $0x8] sm:$0xff] %vm364, %v698
    %1242 = vst.msk [vmem:[#allocation11 + $0x10] sm:$0xff] %vm364, %v920
    %1243 = vst.msk [vmem:[#allocation11 + $0x18] sm:$0xff] %vm364, %v1140
    %1244 = vst.msk [vmem:[#allocation11 + $0x20] sm:$0xff] %vm364, %v478
    %1245 = vst.msk [vmem:[#allocation11 + $0x28] sm:$0xff] %vm364, %v699
    %1246 = vst.msk [vmem:[#allocation11 + $0x30] sm:$0xff] %vm364, %v921
    %1247 = vst.msk [vmem:[#allocation11 + $0x38] sm:$0xff] %vm364, %v1141
    %1250 = vrot.lane.b32.xlu0 %v746, 8
    %v1251 = vpop.permute.xlu0 %1250
    %1252 = vrot.lane.b32.xlu0 %v795, 8
    %v1253 = vpop.permute.xlu0 %1252
    %1258 = vrot.lane.b32.xlu0 %v967, 16
    %v1259 = vpop.permute.xlu0 %1258
    %1260 = vrot.lane.b32.xlu0 %v1015, 16
    %v1261 = vpop.permute.xlu0 %1260
    %1266 = vrot.lane.b32.xlu0 %v1187, 24
    %v1267 = vpop.permute.xlu0 %1266
    %1268 = vrot.lane.b32.xlu0 %v1235, 24
    %v1269 = vpop.permute.xlu0 %1268
    %v1272 = vsel %vm364, %v523, %v1251
    %v1273 = vsel %vm364, %v569, %v1253
    %vm1274 = vcmask 130048
    %v1275 = vsel %vm1274, %v1272, %v1259
    %v1276 = vsel %vm1274, %v1273, %v1261
    %vm1277 = vcmask 195584
    %v1278 = vsel %vm1277, %v1275, %v1267
    %v1279 = vsel %vm1277, %v1276, %v1269
    %v1280 = vpack.c.bf16 %v1279, %v1278
    %v1281 = vld [vmem:[#allocation7] sm:$0xf]
    %v1282 = vld [vmem:[#allocation7 + $0x4] sm:$0xf]
    %v1283 = vld [vmem:[#allocation7 + $0x8] sm:$0xf]
    %v1284 = vld [vmem:[#allocation7 + $0xc] sm:$0xf]
    %v1285 = vld [vmem:[#allocation8] sm:$0x1]
    %v1287 = vlaneseq
    %v1288 = vshrl.u32 %v1287, 7
    %v1289 = vsub.s32 0, %v1288
    %v1290 = vrot.slane %v1285, %v1289
    %v1296 = vunpack.c.l.b16 %v1281
    %v1297 = vunpack.c.l.b16 %v1282
    %v1298 = vunpack.c.l.b16 %v1283
    %v1299 = vunpack.c.l.b16 %v1284
    %v1300 = vpack.c.b16 %v1297, %v1296
    %v1301 = vpack.c.b16 %v1299, %v1298
    %v1305 = vsel %vm116, %v1280, 0
    %1307 = vmatprep.subr.bf16.mxu0 0
    %1308 = vmatpush1.bf16.msra.mxu0 %v1300
    %1309 = vmatprep.subr.bf16.mxu0 0
    %1310 = vmatpush1.bf16.msra.mxu0 %v1301
    %1311 = vmatprep.subr.bf16.mxu0 0
    %1312 = vmatpush1.bf16.msra.mxu0 0
    %1313 = vmatprep.subr.bf16.mxu0 0
    %1314 = vmatpush1.bf16.msra.mxu0 0
    %1315 = vmatprep.subr.bf16.mxu0 0
    %1316 = vmatpush1.bf16.msra.mxu0 0
    %1317 = vmatprep.subr.bf16.mxu0 0
    %1318 = vmatpush1.bf16.msra.mxu0 0
    %1319 = vmatprep.subr.bf16.mxu0 0
    %1320 = vmatpush1.bf16.msra.mxu0 0
    %1321 = vmatprep.subr.bf16.mxu0 0
    %1322 = vmatpush1.bf16.msra.mxu0 0
    %1323 = vmatprep.subr.bf16.mxu0 0
    %1324 = vmatpush1.bf16.msra.mxu0 0
    %1325 = vmatprep.subr.bf16.mxu0 0
    %1326 = vmatpush1.bf16.msra.mxu0 0
    %1327 = vmatprep.subr.bf16.mxu0 0
    %1328 = vmatpush1.bf16.msra.mxu0 0
    %1329 = vmatprep.subr.bf16.mxu0 0
    %1330 = vmatpush1.bf16.msra.mxu0 0
    %1331 = vmatprep.subr.bf16.mxu0 0
    %1332 = vmatpush1.bf16.msra.mxu0 0
    %1333 = vmatprep.subr.bf16.mxu0 0
    %1334 = vmatpush1.bf16.msra.mxu0 0
    %1335 = vmatprep.subr.bf16.mxu0 0
    %1336 = vmatpush1.bf16.msra.mxu0 0
    %1337 = vmatprep.subr.bf16.mxu0 0
    %1338 = vmatpush1.bf16.msra.mxu0 0
    %1339 = vmatprep.mubr.bf16.mxu0 0
    %1340 = vmatmul.mubr.bf16.gmra.mrb[0].mxu0 %v1305
    %v1341 = vpop.f32.mrb[0].mxu0
    %v1342 = vadd.f32 %v1290, %v1341
    %v1343 = vpop.f32.mrb[0].mxu0
    %v1344 = vpop.f32.mrb[0].mxu0
    %v1345 = vadd.f32 %v1290, %v1344
    %v1346 = vpop.f32.mrb[0].mxu0
    %1347 = vdwg.mxu0
    %v1348 = vadd.f32 %v1342, %v112
    %v1349 = vadd.f32 %v1345, %v113
    %v1350 = vld [vmem:[%s15] sm:$0x1]
    %v1351 = vld [vmem:[%s16] sm:$0x1]
    %v1352 = vsel %vm116, %v1348, 0.0
    %1353 = vadd.xlane.f32.xlu0 %v1352
    %v1354 = vpop.xlane.xlu0 %1353
    %v1355 = vsel %vm116, %v1349, 0.0
    %1356 = vadd.xlane.f32.xlu0 %v1355
    %v1357 = vpop.xlane.xlu0 %1356
    %v1358 = vmul.f32 %v1354, %v123
    %v1359 = vmul.f32 %v1357, %v123
    %v1360 = vsub.f32 %v1348, %v1358
    %v1361 = vsub.f32 %v1349, %v1359
    %v1362 = vmul.f32 %v1360, %v1360
    %v1363 = vmul.f32 %v1361, %v1361
    %v1364 = vsel %vm116, %v1362, 0.0
    %1365 = vadd.xlane.f32.xlu0 %v1364
    %v1366 = vpop.xlane.xlu0 %1365
    %v1367 = vsel %vm116, %v1363, 0.0
    %1368 = vadd.xlane.f32.xlu0 %v1367
    %v1369 = vpop.xlane.xlu0 %1368
    %v1370 = vmul.f32 %v1366, %v123
    %v1371 = vmul.f32 %v1369, %v123
    %v1372 = vadd.f32 %v1370, 1e-05
    %v1373 = vadd.f32 %v1371, 1e-05
    %v1374 = vrsqrt.pop %v1372
    %v1375 = vrsqrt.pop %v1373
    %v1376 = vmul.f32 %v1360, %v1374
    %v1377 = vmul.f32 %v1361, %v1375
    %v1379 = vlaneseq
    %v1380 = vshrl.u32 %v1379, 7
    %v1381 = vsub.s32 0, %v1380
    %v1382 = vrot.slane %v1350, %v1381
    %v1384 = vmul.f32 %v1376, %v1382
    %v1385 = vmul.f32 %v1377, %v1382
    %v1387 = vlaneseq
    %v1388 = vshrl.u32 %v1387, 7
    %v1389 = vsub.s32 0, %v1388
    %v1390 = vrot.slane %v1351, %v1389
    %v1392 = vadd.f32 %v1384, %v1390
    %v1393 = vadd.f32 %v1385, %v1390
    %v1394 = vpack.c.bf16 %v1393, %v1392
    %v1395 = vld [vmem:[%s9] sm:$0xf]
    %v1396 = vld [vmem:[%s9 + $0x4] sm:$0xf]
    %v1397 = vld [vmem:[%s9 + $0x8] sm:$0xf]
    %v1398 = vld [vmem:[%s9 + $0xc] sm:$0xf]
    %v1399 = vld [vmem:[%s10] sm:$0x1]
    %v1401 = vlaneseq
    %v1402 = vshrl.u32 %v1401, 7
    %v1403 = vsub.s32 0, %v1402
    %v1404 = vrot.slane %v1399, %v1403
    %v1410 = vunpack.c.l.b16 %v1395
    %v1411 = vunpack.c.l.b16 %v1396
    %v1412 = vunpack.c.l.b16 %v1397
    %v1413 = vunpack.c.l.b16 %v1398
    %v1414 = vpack.c.b16 %v1411, %v1410
    %v1415 = vpack.c.b16 %v1413, %v1412
    %v1419 = vsel %vm116, %v1394, 0
    %1421 = vmatprep.subr.bf16.mxu0 0
    %1422 = vmatpush1.bf16.msra.mxu0 %v1414
    %1423 = vmatprep.subr.bf16.mxu0 0
    %1424 = vmatpush1.bf16.msra.mxu0 %v1415
    %1425 = vmatprep.subr.bf16.mxu0 0
    %1426 = vmatpush1.bf16.msra.mxu0 0
    %1427 = vmatprep.subr.bf16.mxu0 0
    %1428 = vmatpush1.bf16.msra.mxu0 0
    %1429 = vmatprep.subr.bf16.mxu0 0
    %1430 = vmatpush1.bf16.msra.mxu0 0
    %1431 = vmatprep.subr.bf16.mxu0 0
    %1432 = vmatpush1.bf16.msra.mxu0 0
    %1433 = vmatprep.subr.bf16.mxu0 0
    %1434 = vmatpush1.bf16.msra.mxu0 0
    %1435 = vmatprep.subr.bf16.mxu0 0
    %1436 = vmatpush1.bf16.msra.mxu0 0
    %1437 = vmatprep.subr.bf16.mxu0 0
    %1438 = vmatpush1.bf16.msra.mxu0 0
    %1439 = vmatprep.subr.bf16.mxu0 0
    %1440 = vmatpush1.bf16.msra.mxu0 0
    %1441 = vmatprep.subr.bf16.mxu0 0
    %1442 = vmatpush1.bf16.msra.mxu0 0
    %1443 = vmatprep.subr.bf16.mxu0 0
    %1444 = vmatpush1.bf16.msra.mxu0 0
    %1445 = vmatprep.subr.bf16.mxu0 0
    %1446 = vmatpush1.bf16.msra.mxu0 0
    %1447 = vmatprep.subr.bf16.mxu0 0
    %1448 = vmatpush1.bf16.msra.mxu0 0
    %1449 = vmatprep.subr.bf16.mxu0 0
    %1450 = vmatpush1.bf16.msra.mxu0 0
    %1451 = vmatprep.subr.bf16.mxu0 0
    %1452 = vmatpush1.bf16.msra.mxu0 0
    %1453 = vmatprep.mubr.bf16.mxu0 0
    %1454 = vmatmul.mubr.bf16.gmra.mrb[0].mxu0 %v1419
    %v1455 = vpop.f32.mrb[0].mxu0
    %v1456 = vadd.f32 %v1404, %v1455
    %v1457 = vpop.f32.mrb[0].mxu0
    %v1458 = vpop.f32.mrb[0].mxu0
    %v1459 = vadd.f32 %v1404, %v1458
    %v1460 = vpop.f32.mrb[0].mxu0
    %1461 = vdwg.mxu0
    %v1462 = vmax.f32 %v1456, 0.0
    %v1463 = vmax.f32 %v1459, 0.0
    %v1464 = vpack.c.bf16 %v1463, %v1462
    %v1465 = vld [vmem:[%s11] sm:$0xf]
    %v1466 = vld [vmem:[%s11 + $0x4] sm:$0xf]
    %v1467 = vld [vmem:[%s11 + $0x8] sm:$0xf]
    %v1468 = vld [vmem:[%s11 + $0xc] sm:$0xf]
    %v1469 = vld [vmem:[%s11 + $0x10] sm:$0xf]
    %v1470 = vld [vmem:[%s11 + $0x14] sm:$0xf]
    %v1471 = vld [vmem:[%s11 + $0x18] sm:$0xf]
    %v1472 = vld [vmem:[%s11 + $0x1c] sm:$0xf]
    %v1473 = vld [vmem:[%s12] sm:$0x1]
    %v1475 = vlaneseq
    %v1476 = vshrl.u32 %v1475, 7
    %v1477 = vsub.s32 0, %v1476
    %v1478 = vrot.slane %v1473, %v1477
    %v1488 = vunpack.c.l.b16 %v1465
    %v1489 = vunpack.c.l.b16 %v1466
    %v1490 = vunpack.c.l.b16 %v1467
    %v1491 = vunpack.c.l.b16 %v1468
    %v1492 = vunpack.c.l.b16 %v1469
    %v1493 = vunpack.c.l.b16 %v1470
    %v1494 = vunpack.c.l.b16 %v1471
    %v1495 = vunpack.c.l.b16 %v1472
    %v1496 = vpack.c.b16 %v1489, %v1488
    %v1497 = vpack.c.b16 %v1491, %v1490
    %v1498 = vpack.c.b16 %v1493, %v1492
    %v1499 = vpack.c.b16 %v1495, %v1494
    %vm1504 = vcmask 523264
    %v1506 = vsel %vm1504, %v1464, 0
    %1508 = vmatprep.subr.bf16.mxu0 0
    %1509 = vmatpush1.bf16.msra.mxu0 %v1496
    %1510 = vmatprep.subr.bf16.mxu0 0
    %1511 = vmatpush1.bf16.msra.mxu0 %v1497
    %1512 = vmatprep.subr.bf16.mxu0 0
    %1513 = vmatpush1.bf16.msra.mxu0 %v1498
    %1514 = vmatprep.subr.bf16.mxu0 0
    %1515 = vmatpush1.bf16.msra.mxu0 %v1499
    %1516 = vmatprep.subr.bf16.mxu0 0
    %1517 = vmatpush1.bf16.msra.mxu0 0
    %1518 = vmatprep.subr.bf16.mxu0 0
    %1519 = vmatpush1.bf16.msra.mxu0 0
    %1520 = vmatprep.subr.bf16.mxu0 0
    %1521 = vmatpush1.bf16.msra.mxu0 0
    %1522 = vmatprep.subr.bf16.mxu0 0
    %1523 = vmatpush1.bf16.msra.mxu0 0
    %1524 = vmatprep.subr.bf16.mxu0 0
    %1525 = vmatpush1.bf16.msra.mxu0 0
    %1526 = vmatprep.subr.bf16.mxu0 0
    %1527 = vmatpush1.bf16.msra.mxu0 0
    %1528 = vmatprep.subr.bf16.mxu0 0
    %1529 = vmatpush1.bf16.msra.mxu0 0
    %1530 = vmatprep.subr.bf16.mxu0 0
    %1531 = vmatpush1.bf16.msra.mxu0 0
    %1532 = vmatprep.subr.bf16.mxu0 0
    %1533 = vmatpush1.bf16.msra.mxu0 0
    %1534 = vmatprep.subr.bf16.mxu0 0
    %1535 = vmatpush1.bf16.msra.mxu0 0
    %1536 = vmatprep.subr.bf16.mxu0 0
    %1537 = vmatpush1.bf16.msra.mxu0 0
    %1538 = vmatprep.subr.bf16.mxu0 0
    %1539 = vmatpush1.bf16.msra.mxu0 0
    %1540 = vmatprep.mubr.bf16.mxu0 0
    %1541 = vmatmul.mubr.bf16.gmra.mrb[0].mxu0 %v1506
    %v1542 = vpop.f32.mrb[0].mxu0
    %v1543 = vadd.f32 %v1478, %v1542
    %v1544 = vpop.f32.mrb[0].mxu0
    %v1545 = vpop.f32.mrb[0].mxu0
    %v1546 = vadd.f32 %v1478, %v1545
    %v1547 = vpop.f32.mrb[0].mxu0
    %1548 = vdwg.mxu0
    %v1549 = vadd.f32 %v1543, %v1348
    %v1550 = vadd.f32 %v1546, %v1349
    %1551 = vst.msk [vmem:[#allocation10] sm:$0xff] %vm116, %v1549
    %1552 = vst.msk [vmem:[#allocation10 + $0x8] sm:$0xff] %vm116, %v1550
    // Predicated region
    $region86: #{tpu_custom_call.1} parent=1 // pred_check
      _
    $region87: #{tpu_custom_call.1} parent=1 // pred_check_branch
      %1554 = sbr.rel (0) target = $region89
    $region88: #{tpu_custom_call.1} parent=1 // pred_region
      %s1556 = ssub.s32 256, 256
      %1557 = vsyncadd [#allocation4], %s1556
      %s1558 = sshll.u32 [#allocation10], 4
      %s1559 = int_to_ptr.vmem [resolvable:$true] %s1558
      %1564 = dma.vmem_to_hbm [thread:$0]  %s1559, 256, %s17, [#allocation4], 128, 128, 8
    $region89: #{tpu_custom_call.1} parent=1 // pred_fallthru
      _
    // Predicated region
    $region90: #{tpu_custom_call.1} parent=1 // pred_check
      _
    $region91: #{tpu_custom_call.1} parent=1 // pred_check_branch
      %1566 = sbr.rel (0) target = $region93
    $region92: #{tpu_custom_call.1} parent=1 // pred_region
      %s1568 = ssub.s32 1024, 1024
      %1569 = vsyncadd [#allocation12], %s1568
      %s1570 = sshll.u32 [#allocation11], 4
      %s1571 = int_to_ptr.vmem [resolvable:$true] %s1570
      %1576 = dma.vmem_to_hbm [thread:$0]  %s1571, 1024, %s18, [#allocation12], 128, 128, 8
    $region93: #{tpu_custom_call.1} parent=1 // pred_fallthru
      _
    // Predicated region
    $region94: #{tpu_custom_call.1} parent=1 // pred_check
      _
    $region95: #{tpu_custom_call.1} parent=1 // pred_check_branch
      %1578 = sbr.rel (0) target = $region97
    $region96: #{tpu_custom_call.1} parent=1 // pred_region
      %1579 = dma.done [#allocation4], 256
    $region97: #{tpu_custom_call.1} parent=1 // pred_fallthru
      _
    // Predicated region
    $region98: #{tpu_custom_call.1} parent=1 // pred_check
      _
    $region99: #{tpu_custom_call.1} parent=1 // pred_check_branch
      %1581 = sbr.rel (0) target = $region101
    $region100: #{tpu_custom_call.1} parent=1 // pred_region
      %1582 = dma.done [#allocation12], 1024
    $region101: #{tpu_custom_call.1} parent=1 // pred_fallthru
      _
    %1583 = vsyncpa [#allocation3], 1
    %1584 = vsyncpa [#allocation6], 1
    %1585 = vsyncpa [#allocation9], 1
    %1586 = vsyncpa [#allocation4], 1
    %1587 = vsyncpa [#allocation12], 1

</llo_original>
